<compile_context>
chip_gen: v7x
topology: tpu7x:2x2x1
jax: 0.10.0
libtpu: 0.0.40
codegen_flags: <defaults>
</compile_context>

<pallas_src>
import jax
import jax.numpy as jnp
import numpy as np
from jax.experimental import pallas as pl
from jax.experimental.pallas import tpu as pltpu


def multitask_lstm_kernel(x_ref, w_ih_ref, w_hh_ref, b_ref,
                          w_head_ref, w_day_ref, b_out_ref, out_ref):
    # x_ref:     (T+1, Bt)  row t = x_t across the batch tile, last row = day feature
    # w_ih_ref:  (4H, 1)    gate rows ordered [i, f, o, g]
    # w_hh_ref:  (4H, H)
    # b_ref:     (4H, 1)    b_ih + b_hh
    # w_head_ref:(2, H)     row 0 = churn head, row 1 = ltv head
    # w_day_ref: (2, 1)
    # b_out_ref: (2, 1)
    # out_ref:   (2, Bt)    row 0 = churn (sigmoid applied), row 1 = ltv
    x = x_ref[...]
    w_ih = w_ih_ref[...]
    w_hh = w_hh_ref[...]
    b = b_ref[...]

    Tp1, Bt = x.shape
    T = Tp1 - 1
    H = w_hh.shape[1]

    h = jnp.zeros((H, Bt), jnp.float32)
    c = jnp.zeros((H, Bt), jnp.float32)

    # Static (trace-time) unroll; T=8 is small so no vreg-spill pressure.
    # TODO(synk): switch to lax.fori_loop(..., unroll=True) over a (T, 4H, Bt)
    # buffer with pl.ds indexing if T grows beyond ~32.
    for t in range(T):
        x_t = x[t:t + 1, :]                                        # (1, Bt)
        # Recurrence matmul on the MXU; the K=1 input projection is a VPU
        # broadcast-multiply (never a K=1 MXU issue).
        gates = (jnp.dot(w_hh, h, preferred_element_type=jnp.float32)
                 + w_ih * x_t + b)                                  # (4H, Bt)
        # Gate order [i, f, o, g]: sigmoid over a contiguous (3H, Bt) sublane
        # slab, tanh only on the g rows (H, Bt).
        sig = jax.nn.sigmoid(gates[0:3 * H, :])                     # (3H, Bt)
        g_g = jnp.tanh(gates[3 * H:4 * H, :])                       # (H, Bt)
        i_g = sig[0:H, :]
        f_g = sig[H:2 * H, :]
        o_g = sig[2 * H:3 * H, :]
        c = f_g * c + i_g * g_g
        h = o_g * jnp.tanh(c)

    day = x[T:T + 1, :]                                             # (1, Bt)

    # Fused heads: [W_h | w_day] @ [h; day] + b. The day term is K=1 -> VPU.
    out = (jnp.dot(w_head_ref[...], h, preferred_element_type=jnp.float32)
           + w_day_ref[...] * day
           + b_out_ref[...])                                        # (2, Bt)

    # Single lane-dense (2, Bt) store; sigmoid only on row 0 via a select.
    row = jax.lax.broadcasted_iota(jnp.int32, out.shape, 0)
    out_ref[...] = jnp.where(row == 0, jax.nn.sigmoid(out), out)


def _pick_batch_tile(B, b_tile):
    """Returns (tb, Bp): lane-aligned batch tile and padded batch size."""
    if B <= 128:
        # Single block; block last dim == full array dim is always legal.
        return B, B
    # Lane-aligned tile, and prefer >= 2 grid steps so v7x's two TensorCores
    # both get work under dimension_semantics=("parallel",).
    half = 128 * ((B + 2 * 128 - 1) // (2 * 128))
    tb = max(128, min(b_tile, half))
    tb = (tb // 128) * 128
    Bp = ((B + tb - 1) // tb) * tb
    return tb, Bp


def multitask_lstm_forward(x, params, *, b_tile=1024):
    """x: (B, T+1) float32. Returns (churn (B,1), ltv (B,1))."""
    B, Tp1 = x.shape
    assert Tp1 >= 2
    H = params["weight_hh"].shape[1]

    # ---- layout plumbing (outside the kernel) ----
    # Gate permutation [i, f, g, o] -> [i, f, o, g].
    perm = np.concatenate([np.arange(0, H), np.arange(H, 2 * H),
                           np.arange(3 * H, 4 * H), np.arange(2 * H, 3 * H)])
    w_ih_k = params["weight_ih"][perm]                               # (4H, 1)
    w_hh_k = params["weight_hh"][perm]                               # (4H, H)
    b_k = (params["bias_ih"] + params["bias_hh"])[perm].reshape(4 * H, 1)

    w_c, w_l = params["w_churn"], params["w_ltv"]                    # (1, H+1) each
    w_head = jnp.concatenate([w_c[:, :H], w_l[:, :H]], axis=0)       # (2, H)
    w_day = jnp.concatenate([w_c[:, H:], w_l[:, H:]], axis=0)        # (2, 1)
    b_out = jnp.stack([params["b_churn"], params["b_ltv"]]).reshape(2, 1)

    # Batch-in-lanes: feed x transposed, pad batch to a tile multiple.
    tb, Bp = _pick_batch_tile(B, b_tile)
    x_t = x.T.astype(jnp.float32)                                    # (T+1, B)
    if Bp > B:
        x_t = jnp.pad(x_t, ((0, 0), (0, Bp - B)))

    grid = (Bp // tb,)

    def wspec(shape):
        return pl.BlockSpec(shape, lambda i: (0, 0))

    out = pl.pallas_call(
        multitask_lstm_kernel,
        out_shape=jax.ShapeDtypeStruct((2, Bp), jnp.float32),
        grid=grid,
        in_specs=[
            pl.BlockSpec((Tp1, tb), lambda i: (0, i)),   # x^T batch tile (lane-dense)
            wspec((4 * H, 1)),                           # w_ih
            wspec((4 * H, H)),                           # w_hh
            wspec((4 * H, 1)),                           # b
            wspec((2, H)),                               # w_head
            wspec((2, 1)),                               # w_day
            wspec((2, 1)),                               # b_out
        ],
        out_specs=pl.BlockSpec((2, tb), lambda i: (0, i)),
        compiler_params=pltpu.CompilerParams(
            dimension_semantics=("parallel",)),          # v7x: shard batch over 2 TCs
    )(x_t, w_ih_k, w_hh_k, b_k, w_head, w_day, b_out)

    out = out[:, :B]                                     # drop batch padding
    churn = out[0:1, :].T                                # (B, 1)
    ltv = out[1:2, :].T                                  # (B, 1)
    return churn, ltv


def init_params(key, hidden_size):
    """PyTorch-layout parameters (uniform(-1/sqrt(fan), 1/sqrt(fan)) init)."""
    H = hidden_size
    k = 1.0 / np.sqrt(H)
    kf = 1.0 / np.sqrt(H + 1)
    keys = jax.random.split(key, 8)
    u = lambda kk, shape, bound: jax.random.uniform(
        kk, shape, jnp.float32, minval=-bound, maxval=bound)
    return {
        "weight_ih": u(keys[0], (4 * H, 1), k),      # nn.LSTM weight_ih_l0
        "weight_hh": u(keys[1], (4 * H, H), k),      # nn.LSTM weight_hh_l0
        "bias_ih": u(keys[2], (4 * H,), k),
        "bias_hh": u(keys[3], (4 * H,), k),
        "w_churn": u(keys[4], (1, H + 1), kf),       # fc_churn.weight
        "w_ltv": u(keys[5], (1, H + 1), kf),         # fc_ltv.weight
        "b_churn": u(keys[6], (1,), kf),
        "b_ltv": u(keys[7], (1,), kf),
    }


def reference_forward(x, params):
    """Pure-JAX reference matching PyTorch nn.LSTM (gate order i,f,g,o) + heads."""
    B, Tp1 = x.shape
    T = Tp1 - 1
    H = params["weight_hh"].shape[1]
    w_ih = params["weight_ih"]
    w_hh = params["weight_hh"]
    b = params["bias_ih"] + params["bias_hh"]
    h = jnp.zeros((B, H), jnp.float32)
    c = jnp.zeros((B, H), jnp.float32)
    for t in range(T):
        gates = x[:, t:t + 1] @ w_ih.T + h @ w_hh.T + b
        i_g = jax.nn.sigmoid(gates[:, 0:H])
        f_g = jax.nn.sigmoid(gates[:, H:2 * H])
        g_g = jnp.tanh(gates[:, 2 * H:3 * H])
        o_g = jax.nn.sigmoid(gates[:, 3 * H:4 * H])
        c = f_g * c + i_g * g_g
        h = o_g * jnp.tanh(c)
    day = x[:, T:T + 1]
    combined = jnp.concatenate([h, day], axis=1)
    churn = jax.nn.sigmoid(combined @ params["w_churn"].T + params["b_churn"])
    ltv = combined @ params["w_ltv"].T + params["b_ltv"]
    return churn, ltv


if __name__ == "__main__":
    B, T, H = 2, 8, 32            # batch=2, seq_len=8, hidden=32 -> x is (2, 9)
    key = jax.random.PRNGKey(0)
    kx, kp = jax.random.split(key)
    x = jax.random.normal(kx, (B, T + 1), jnp.float32)
    params = init_params(kp, H)

    churn, ltv = multitask_lstm_forward(x, params)
    churn = jax.block_until_ready(churn)
    ltv = jax.block_until_ready(ltv)

    churn_ref, ltv_ref = reference_forward(x, params)
    np.testing.assert_allclose(np.asarray(churn), np.asarray(churn_ref),
                               rtol=1e-5, atol=1e-5)
    np.testing.assert_allclose(np.asarray(ltv), np.asarray(ltv_ref),
                               rtol=1e-5, atol=1e-5)

    assert churn.shape == (B, 1) and ltv.shape == (B, 1)
    print("KERNEL_OK")
</pallas_src>

<mosaic_0001>
module attributes {stable_mosaic.version = 11 : i64} {
  func.func @multitask_lstm_kernel(%arg0: i32, %arg1: memref<9x2xf32, #tpu.memory_space<vmem>>, %arg2: memref<128x1xf32, #tpu.memory_space<vmem>>, %arg3: memref<128x32xf32, #tpu.memory_space<vmem>>, %arg4: memref<128x1xf32, #tpu.memory_space<vmem>>, %arg5: memref<2x32xf32, #tpu.memory_space<vmem>>, %arg6: memref<2x1xf32, #tpu.memory_space<vmem>>, %arg7: memref<2x1xf32, #tpu.memory_space<vmem>>, %arg8: memref<2x2xf32, #tpu.memory_space<vmem>>) attributes {dimension_semantics = [#tpu.dimension_semantics<parallel>], iteration_bounds = array<i64: 1>, scalar_prefetch = 0 : i64, scratch_operands = 0 : i64, tpu.core_type = #tpu.core_type<tc>, window_params = [{transform_indices = @transform_0, window_bounds = array<i64: 9, 2>}, {pipeline_mode = #tpu.pipeline_mode<synchronous>, transform_indices = @transform_1, window_bounds = array<i64: 128, 1>}, {pipeline_mode = #tpu.pipeline_mode<synchronous>, transform_indices = @transform_2, window_bounds = array<i64: 128, 32>}, {pipeline_mode = #tpu.pipeline_mode<synchronous>, transform_indices = @transform_3, window_bounds = array<i64: 128, 1>}, {pipeline_mode = #tpu.pipeline_mode<synchronous>, transform_indices = @transform_4, window_bounds = array<i64: 2, 32>}, {pipeline_mode = #tpu.pipeline_mode<synchronous>, transform_indices = @transform_5, window_bounds = array<i64: 2, 1>}, {pipeline_mode = #tpu.pipeline_mode<synchronous>, transform_indices = @transform_6, window_bounds = array<i64: 2, 1>}, {transform_indices = @transform_7, window_bounds = array<i64: 2, 2>}]} {
    %c0 = arith.constant 0 : index
    %c0_0 = arith.constant 0 : index
    %0 = vector.load %arg1[%c0, %c0_0] : memref<9x2xf32, #tpu.memory_space<vmem>>, vector<9x2xf32>
    %c0_1 = arith.constant 0 : index
    %c0_2 = arith.constant 0 : index
    %1 = vector.load %arg2[%c0_1, %c0_2] : memref<128x1xf32, #tpu.memory_space<vmem>>, vector<128x1xf32>
    %c0_3 = arith.constant 0 : index
    %c0_4 = arith.constant 0 : index
    %2 = vector.load %arg3[%c0_3, %c0_4] : memref<128x32xf32, #tpu.memory_space<vmem>>, vector<128x32xf32>
    %c0_5 = arith.constant 0 : index
    %c0_6 = arith.constant 0 : index
    %3 = vector.load %arg4[%c0_5, %c0_6] : memref<128x1xf32, #tpu.memory_space<vmem>>, vector<128x1xf32>
    %cst = arith.constant 0.000000e+00 : f32
    %4 = vector.broadcast %cst : f32 to vector<32x2xf32>
    %cst_7 = arith.constant 0.000000e+00 : f32
    %5 = vector.broadcast %cst_7 : f32 to vector<32x2xf32>
    %6 = vector.extract_strided_slice %0 {offsets = [0, 0], sizes = [1, 2], strides = [1, 1]} : vector<9x2xf32> to vector<1x2xf32>
    %cst_8 = arith.constant dense<0.000000e+00> : vector<128x2xf32>
    %7 = tpu.matmul %2, %4, %cst_8 {dimension_numbers = #tpu.dot_dimension_numbers<[1], [0], [0], [1], [0, 0, 1, 1], [], []>} : vector<128x32xf32>, vector<32x2xf32>, vector<128x2xf32> -> vector<128x2xf32>
    %8 = vector.broadcast %1 : vector<128x1xf32> to vector<128x2xf32>
    %9 = vector.broadcast %6 : vector<1x2xf32> to vector<128x2xf32>
    %10 = arith.mulf %8, %9 : vector<128x2xf32>
    %11 = arith.addf %7, %10 : vector<128x2xf32>
    %12 = vector.broadcast %3 : vector<128x1xf32> to vector<128x2xf32>
    %13 = arith.addf %11, %12 : vector<128x2xf32>
    %14 = vector.extract_strided_slice %13 {offsets = [0, 0], sizes = [96, 2], strides = [1, 1]} : vector<128x2xf32> to vector<96x2xf32>
    %15 = arith.negf %14 : vector<96x2xf32>
    %16 = math.exp %15 : vector<96x2xf32>
    %cst_9 = arith.constant 1.000000e+00 : f32
    %17 = vector.broadcast %cst_9 : f32 to vector<96x2xf32>
    %18 = arith.addf %17, %16 : vector<96x2xf32>
    %19 = arith.divf %17, %18 : vector<96x2xf32>
    %20 = vector.extract_strided_slice %13 {offsets = [96, 0], sizes = [32, 2], strides = [1, 1]} : vector<128x2xf32> to vector<32x2xf32>
    %21 = math.tanh %20 : vector<32x2xf32>
    %22 = vector.extract_strided_slice %19 {offsets = [0, 0], sizes = [32, 2], strides = [1, 1]} : vector<96x2xf32> to vector<32x2xf32>
    %23 = vector.extract_strided_slice %19 {offsets = [32, 0], sizes = [32, 2], strides = [1, 1]} : vector<96x2xf32> to vector<32x2xf32>
    %24 = vector.extract_strided_slice %19 {offsets = [64, 0], sizes = [32, 2], strides = [1, 1]} : vector<96x2xf32> to vector<32x2xf32>
    %25 = arith.mulf %23, %5 : vector<32x2xf32>
    %26 = arith.mulf %22, %21 : vector<32x2xf32>
    %27 = arith.addf %25, %26 : vector<32x2xf32>
    %28 = math.tanh %27 : vector<32x2xf32>
    %29 = arith.mulf %24, %28 : vector<32x2xf32>
    %30 = vector.extract_strided_slice %0 {offsets = [1, 0], sizes = [1, 2], strides = [1, 1]} : vector<9x2xf32> to vector<1x2xf32>
    %cst_10 = arith.constant dense<0.000000e+00> : vector<128x2xf32>
    %31 = tpu.matmul %2, %29, %cst_10 {dimension_numbers = #tpu.dot_dimension_numbers<[1], [0], [0], [1], [0, 0, 1, 1], [], []>} : vector<128x32xf32>, vector<32x2xf32>, vector<128x2xf32> -> vector<128x2xf32>
    %32 = vector.broadcast %1 : vector<128x1xf32> to vector<128x2xf32>
    %33 = vector.broadcast %30 : vector<1x2xf32> to vector<128x2xf32>
    %34 = arith.mulf %32, %33 : vector<128x2xf32>
    %35 = arith.addf %31, %34 : vector<128x2xf32>
    %36 = vector.broadcast %3 : vector<128x1xf32> to vector<128x2xf32>
    %37 = arith.addf %35, %36 : vector<128x2xf32>
    %38 = vector.extract_strided_slice %37 {offsets = [0, 0], sizes = [96, 2], strides = [1, 1]} : vector<128x2xf32> to vector<96x2xf32>
    %39 = arith.negf %38 : vector<96x2xf32>
    %40 = math.exp %39 : vector<96x2xf32>
    %cst_11 = arith.constant 1.000000e+00 : f32
    %41 = vector.broadcast %cst_11 : f32 to vector<96x2xf32>
    %42 = arith.addf %41, %40 : vector<96x2xf32>
    %43 = arith.divf %41, %42 : vector<96x2xf32>
    %44 = vector.extract_strided_slice %37 {offsets = [96, 0], sizes = [32, 2], strides = [1, 1]} : vector<128x2xf32> to vector<32x2xf32>
    %45 = math.tanh %44 : vector<32x2xf32>
    %46 = vector.extract_strided_slice %43 {offsets = [0, 0], sizes = [32, 2], strides = [1, 1]} : vector<96x2xf32> to vector<32x2xf32>
    %47 = vector.extract_strided_slice %43 {offsets = [32, 0], sizes = [32, 2], strides = [1, 1]} : vector<96x2xf32> to vector<32x2xf32>
    %48 = vector.extract_strided_slice %43 {offsets = [64, 0], sizes = [32, 2], strides = [1, 1]} : vector<96x2xf32> to vector<32x2xf32>
    %49 = arith.mulf %47, %27 : vector<32x2xf32>
    %50 = arith.mulf %46, %45 : vector<32x2xf32>
    %51 = arith.addf %49, %50 : vector<32x2xf32>
    %52 = math.tanh %51 : vector<32x2xf32>
    %53 = arith.mulf %48, %52 : vector<32x2xf32>
    %54 = vector.extract_strided_slice %0 {offsets = [2, 0], sizes = [1, 2], strides = [1, 1]} : vector<9x2xf32> to vector<1x2xf32>
    %cst_12 = arith.constant dense<0.000000e+00> : vector<128x2xf32>
    %55 = tpu.matmul %2, %53, %cst_12 {dimension_numbers = #tpu.dot_dimension_numbers<[1], [0], [0], [1], [0, 0, 1, 1], [], []>} : vector<128x32xf32>, vector<32x2xf32>, vector<128x2xf32> -> vector<128x2xf32>
    %56 = vector.broadcast %1 : vector<128x1xf32> to vector<128x2xf32>
    %57 = vector.broadcast %54 : vector<1x2xf32> to vector<128x2xf32>
    %58 = arith.mulf %56, %57 : vector<128x2xf32>
    %59 = arith.addf %55, %58 : vector<128x2xf32>
    %60 = vector.broadcast %3 : vector<128x1xf32> to vector<128x2xf32>
    %61 = arith.addf %59, %60 : vector<128x2xf32>
    %62 = vector.extract_strided_slice %61 {offsets = [0, 0], sizes = [96, 2], strides = [1, 1]} : vector<128x2xf32> to vector<96x2xf32>
    %63 = arith.negf %62 : vector<96x2xf32>
    %64 = math.exp %63 : vector<96x2xf32>
    %cst_13 = arith.constant 1.000000e+00 : f32
    %65 = vector.broadcast %cst_13 : f32 to vector<96x2xf32>
    %66 = arith.addf %65, %64 : vector<96x2xf32>
    %67 = arith.divf %65, %66 : vector<96x2xf32>
    %68 = vector.extract_strided_slice %61 {offsets = [96, 0], sizes = [32, 2], strides = [1, 1]} : vector<128x2xf32> to vector<32x2xf32>
    %69 = math.tanh %68 : vector<32x2xf32>
    %70 = vector.extract_strided_slice %67 {offsets = [0, 0], sizes = [32, 2], strides = [1, 1]} : vector<96x2xf32> to vector<32x2xf32>
    %71 = vector.extract_strided_slice %67 {offsets = [32, 0], sizes = [32, 2], strides = [1, 1]} : vector<96x2xf32> to vector<32x2xf32>
    %72 = vector.extract_strided_slice %67 {offsets = [64, 0], sizes = [32, 2], strides = [1, 1]} : vector<96x2xf32> to vector<32x2xf32>
    %73 = arith.mulf %71, %51 : vector<32x2xf32>
    %74 = arith.mulf %70, %69 : vector<32x2xf32>
    %75 = arith.addf %73, %74 : vector<32x2xf32>
    %76 = math.tanh %75 : vector<32x2xf32>
    %77 = arith.mulf %72, %76 : vector<32x2xf32>
    %78 = vector.extract_strided_slice %0 {offsets = [3, 0], sizes = [1, 2], strides = [1, 1]} : vector<9x2xf32> to vector<1x2xf32>
    %cst_14 = arith.constant dense<0.000000e+00> : vector<128x2xf32>
    %79 = tpu.matmul %2, %77, %cst_14 {dimension_numbers = #tpu.dot_dimension_numbers<[1], [0], [0], [1], [0, 0, 1, 1], [], []>} : vector<128x32xf32>, vector<32x2xf32>, vector<128x2xf32> -> vector<128x2xf32>
    %80 = vector.broadcast %1 : vector<128x1xf32> to vector<128x2xf32>
    %81 = vector.broadcast %78 : vector<1x2xf32> to vector<128x2xf32>
    %82 = arith.mulf %80, %81 : vector<128x2xf32>
    %83 = arith.addf %79, %82 : vector<128x2xf32>
    %84 = vector.broadcast %3 : vector<128x1xf32> to vector<128x2xf32>
    %85 = arith.addf %83, %84 : vector<128x2xf32>
    %86 = vector.extract_strided_slice %85 {offsets = [0, 0], sizes = [96, 2], strides = [1, 1]} : vector<128x2xf32> to vector<96x2xf32>
    %87 = arith.negf %86 : vector<96x2xf32>
    %88 = math.exp %87 : vector<96x2xf32>
    %cst_15 = arith.constant 1.000000e+00 : f32
    %89 = vector.broadcast %cst_15 : f32 to vector<96x2xf32>
    %90 = arith.addf %89, %88 : vector<96x2xf32>
    %91 = arith.divf %89, %90 : vector<96x2xf32>
    %92 = vector.extract_strided_slice %85 {offsets = [96, 0], sizes = [32, 2], strides = [1, 1]} : vector<128x2xf32> to vector<32x2xf32>
    %93 = math.tanh %92 : vector<32x2xf32>
    %94 = vector.extract_strided_slice %91 {offsets = [0, 0], sizes = [32, 2], strides = [1, 1]} : vector<96x2xf32> to vector<32x2xf32>
    %95 = vector.extract_strided_slice %91 {offsets = [32, 0], sizes = [32, 2], strides = [1, 1]} : vector<96x2xf32> to vector<32x2xf32>
    %96 = vector.extract_strided_slice %91 {offsets = [64, 0], sizes = [32, 2], strides = [1, 1]} : vector<96x2xf32> to vector<32x2xf32>
    %97 = arith.mulf %95, %75 : vector<32x2xf32>
    %98 = arith.mulf %94, %93 : vector<32x2xf32>
    %99 = arith.addf %97, %98 : vector<32x2xf32>
    %100 = math.tanh %99 : vector<32x2xf32>
    %101 = arith.mulf %96, %100 : vector<32x2xf32>
    %102 = vector.extract_strided_slice %0 {offsets = [4, 0], sizes = [1, 2], strides = [1, 1]} : vector<9x2xf32> to vector<1x2xf32>
    %cst_16 = arith.constant dense<0.000000e+00> : vector<128x2xf32>
    %103 = tpu.matmul %2, %101, %cst_16 {dimension_numbers = #tpu.dot_dimension_numbers<[1], [0], [0], [1], [0, 0, 1, 1], [], []>} : vector<128x32xf32>, vector<32x2xf32>, vector<128x2xf32> -> vector<128x2xf32>
    %104 = vector.broadcast %1 : vector<128x1xf32> to vector<128x2xf32>
    %105 = vector.broadcast %102 : vector<1x2xf32> to vector<128x2xf32>
    %106 = arith.mulf %104, %105 : vector<128x2xf32>
    %107 = arith.addf %103, %106 : vector<128x2xf32>
    %108 = vector.broadcast %3 : vector<128x1xf32> to vector<128x2xf32>
    %109 = arith.addf %107, %108 : vector<128x2xf32>
    %110 = vector.extract_strided_slice %109 {offsets = [0, 0], sizes = [96, 2], strides = [1, 1]} : vector<128x2xf32> to vector<96x2xf32>
    %111 = arith.negf %110 : vector<96x2xf32>
    %112 = math.exp %111 : vector<96x2xf32>
    %cst_17 = arith.constant 1.000000e+00 : f32
    %113 = vector.broadcast %cst_17 : f32 to vector<96x2xf32>
    %114 = arith.addf %113, %112 : vector<96x2xf32>
    %115 = arith.divf %113, %114 : vector<96x2xf32>
    %116 = vector.extract_strided_slice %109 {offsets = [96, 0], sizes = [32, 2], strides = [1, 1]} : vector<128x2xf32> to vector<32x2xf32>
    %117 = math.tanh %116 : vector<32x2xf32>
    %118 = vector.extract_strided_slice %115 {offsets = [0, 0], sizes = [32, 2], strides = [1, 1]} : vector<96x2xf32> to vector<32x2xf32>
    %119 = vector.extract_strided_slice %115 {offsets = [32, 0], sizes = [32, 2], strides = [1, 1]} : vector<96x2xf32> to vector<32x2xf32>
    %120 = vector.extract_strided_slice %115 {offsets = [64, 0], sizes = [32, 2], strides = [1, 1]} : vector<96x2xf32> to vector<32x2xf32>
    %121 = arith.mulf %119, %99 : vector<32x2xf32>
    %122 = arith.mulf %118, %117 : vector<32x2xf32>
    %123 = arith.addf %121, %122 : vector<32x2xf32>
    %124 = math.tanh %123 : vector<32x2xf32>
    %125 = arith.mulf %120, %124 : vector<32x2xf32>
    %126 = vector.extract_strided_slice %0 {offsets = [5, 0], sizes = [1, 2], strides = [1, 1]} : vector<9x2xf32> to vector<1x2xf32>
    %cst_18 = arith.constant dense<0.000000e+00> : vector<128x2xf32>
    %127 = tpu.matmul %2, %125, %cst_18 {dimension_numbers = #tpu.dot_dimension_numbers<[1], [0], [0], [1], [0, 0, 1, 1], [], []>} : vector<128x32xf32>, vector<32x2xf32>, vector<128x2xf32> -> vector<128x2xf32>
    %128 = vector.broadcast %1 : vector<128x1xf32> to vector<128x2xf32>
    %129 = vector.broadcast %126 : vector<1x2xf32> to vector<128x2xf32>
    %130 = arith.mulf %128, %129 : vector<128x2xf32>
    %131 = arith.addf %127, %130 : vector<128x2xf32>
    %132 = vector.broadcast %3 : vector<128x1xf32> to vector<128x2xf32>
    %133 = arith.addf %131, %132 : vector<128x2xf32>
    %134 = vector.extract_strided_slice %133 {offsets = [0, 0], sizes = [96, 2], strides = [1, 1]} : vector<128x2xf32> to vector<96x2xf32>
    %135 = arith.negf %134 : vector<96x2xf32>
    %136 = math.exp %135 : vector<96x2xf32>
    %cst_19 = arith.constant 1.000000e+00 : f32
    %137 = vector.broadcast %cst_19 : f32 to vector<96x2xf32>
    %138 = arith.addf %137, %136 : vector<96x2xf32>
    %139 = arith.divf %137, %138 : vector<96x2xf32>
    %140 = vector.extract_strided_slice %133 {offsets = [96, 0], sizes = [32, 2], strides = [1, 1]} : vector<128x2xf32> to vector<32x2xf32>
    %141 = math.tanh %140 : vector<32x2xf32>
    %142 = vector.extract_strided_slice %139 {offsets = [0, 0], sizes = [32, 2], strides = [1, 1]} : vector<96x2xf32> to vector<32x2xf32>
    %143 = vector.extract_strided_slice %139 {offsets = [32, 0], sizes = [32, 2], strides = [1, 1]} : vector<96x2xf32> to vector<32x2xf32>
    %144 = vector.extract_strided_slice %139 {offsets = [64, 0], sizes = [32, 2], strides = [1, 1]} : vector<96x2xf32> to vector<32x2xf32>
    %145 = arith.mulf %143, %123 : vector<32x2xf32>
    %146 = arith.mulf %142, %141 : vector<32x2xf32>
    %147 = arith.addf %145, %146 : vector<32x2xf32>
    %148 = math.tanh %147 : vector<32x2xf32>
    %149 = arith.mulf %144, %148 : vector<32x2xf32>
    %150 = vector.extract_strided_slice %0 {offsets = [6, 0], sizes = [1, 2], strides = [1, 1]} : vector<9x2xf32> to vector<1x2xf32>
    %cst_20 = arith.constant dense<0.000000e+00> : vector<128x2xf32>
    %151 = tpu.matmul %2, %149, %cst_20 {dimension_numbers = #tpu.dot_dimension_numbers<[1], [0], [0], [1], [0, 0, 1, 1], [], []>} : vector<128x32xf32>, vector<32x2xf32>, vector<128x2xf32> -> vector<128x2xf32>
    %152 = vector.broadcast %1 : vector<128x1xf32> to vector<128x2xf32>
    %153 = vector.broadcast %150 : vector<1x2xf32> to vector<128x2xf32>
    %154 = arith.mulf %152, %153 : vector<128x2xf32>
    %155 = arith.addf %151, %154 : vector<128x2xf32>
    %156 = vector.broadcast %3 : vector<128x1xf32> to vector<128x2xf32>
    %157 = arith.addf %155, %156 : vector<128x2xf32>
    %158 = vector.extract_strided_slice %157 {offsets = [0, 0], sizes = [96, 2], strides = [1, 1]} : vector<128x2xf32> to vector<96x2xf32>
    %159 = arith.negf %158 : vector<96x2xf32>
    %160 = math.exp %159 : vector<96x2xf32>
    %cst_21 = arith.constant 1.000000e+00 : f32
    %161 = vector.broadcast %cst_21 : f32 to vector<96x2xf32>
    %162 = arith.addf %161, %160 : vector<96x2xf32>
    %163 = arith.divf %161, %162 : vector<96x2xf32>
    %164 = vector.extract_strided_slice %157 {offsets = [96, 0], sizes = [32, 2], strides = [1, 1]} : vector<128x2xf32> to vector<32x2xf32>
    %165 = math.tanh %164 : vector<32x2xf32>
    %166 = vector.extract_strided_slice %163 {offsets = [0, 0], sizes = [32, 2], strides = [1, 1]} : vector<96x2xf32> to vector<32x2xf32>
    %167 = vector.extract_strided_slice %163 {offsets = [32, 0], sizes = [32, 2], strides = [1, 1]} : vector<96x2xf32> to vector<32x2xf32>
    %168 = vector.extract_strided_slice %163 {offsets = [64, 0], sizes = [32, 2], strides = [1, 1]} : vector<96x2xf32> to vector<32x2xf32>
    %169 = arith.mulf %167, %147 : vector<32x2xf32>
    %170 = arith.mulf %166, %165 : vector<32x2xf32>
    %171 = arith.addf %169, %170 : vector<32x2xf32>
    %172 = math.tanh %171 : vector<32x2xf32>
    %173 = arith.mulf %168, %172 : vector<32x2xf32>
    %174 = vector.extract_strided_slice %0 {offsets = [7, 0], sizes = [1, 2], strides = [1, 1]} : vector<9x2xf32> to vector<1x2xf32>
    %cst_22 = arith.constant dense<0.000000e+00> : vector<128x2xf32>
    %175 = tpu.matmul %2, %173, %cst_22 {dimension_numbers = #tpu.dot_dimension_numbers<[1], [0], [0], [1], [0, 0, 1, 1], [], []>} : vector<128x32xf32>, vector<32x2xf32>, vector<128x2xf32> -> vector<128x2xf32>
    %176 = vector.broadcast %1 : vector<128x1xf32> to vector<128x2xf32>
    %177 = vector.broadcast %174 : vector<1x2xf32> to vector<128x2xf32>
    %178 = arith.mulf %176, %177 : vector<128x2xf32>
    %179 = arith.addf %175, %178 : vector<128x2xf32>
    %180 = vector.broadcast %3 : vector<128x1xf32> to vector<128x2xf32>
    %181 = arith.addf %179, %180 : vector<128x2xf32>
    %182 = vector.extract_strided_slice %181 {offsets = [0, 0], sizes = [96, 2], strides = [1, 1]} : vector<128x2xf32> to vector<96x2xf32>
    %183 = arith.negf %182 : vector<96x2xf32>
    %184 = math.exp %183 : vector<96x2xf32>
    %cst_23 = arith.constant 1.000000e+00 : f32
    %185 = vector.broadcast %cst_23 : f32 to vector<96x2xf32>
    %186 = arith.addf %185, %184 : vector<96x2xf32>
    %187 = arith.divf %185, %186 : vector<96x2xf32>
    %188 = vector.extract_strided_slice %181 {offsets = [96, 0], sizes = [32, 2], strides = [1, 1]} : vector<128x2xf32> to vector<32x2xf32>
    %189 = math.tanh %188 : vector<32x2xf32>
    %190 = vector.extract_strided_slice %187 {offsets = [0, 0], sizes = [32, 2], strides = [1, 1]} : vector<96x2xf32> to vector<32x2xf32>
    %191 = vector.extract_strided_slice %187 {offsets = [32, 0], sizes = [32, 2], strides = [1, 1]} : vector<96x2xf32> to vector<32x2xf32>
    %192 = vector.extract_strided_slice %187 {offsets = [64, 0], sizes = [32, 2], strides = [1, 1]} : vector<96x2xf32> to vector<32x2xf32>
    %193 = arith.mulf %191, %171 : vector<32x2xf32>
    %194 = arith.mulf %190, %189 : vector<32x2xf32>
    %195 = arith.addf %193, %194 : vector<32x2xf32>
    %196 = math.tanh %195 : vector<32x2xf32>
    %197 = arith.mulf %192, %196 : vector<32x2xf32>
    %198 = vector.extract_strided_slice %0 {offsets = [8, 0], sizes = [1, 2], strides = [1, 1]} : vector<9x2xf32> to vector<1x2xf32>
    %c0_24 = arith.constant 0 : index
    %c0_25 = arith.constant 0 : index
    %199 = vector.load %arg5[%c0_24, %c0_25] : memref<2x32xf32, #tpu.memory_space<vmem>>, vector<2x32xf32>
    %cst_26 = arith.constant dense<0.000000e+00> : vector<2x2xf32>
    %200 = tpu.matmul %199, %197, %cst_26 {dimension_numbers = #tpu.dot_dimension_numbers<[1], [0], [0], [1], [0, 0, 1, 1], [], []>} : vector<2x32xf32>, vector<32x2xf32>, vector<2x2xf32> -> vector<2x2xf32>
    %c0_27 = arith.constant 0 : index
    %c0_28 = arith.constant 0 : index
    %201 = vector.load %arg6[%c0_27, %c0_28] : memref<2x1xf32, #tpu.memory_space<vmem>>, vector<2x1xf32>
    %202 = vector.broadcast %201 : vector<2x1xf32> to vector<2x2xf32>
    %203 = vector.broadcast %198 : vector<1x2xf32> to vector<2x2xf32>
    %204 = arith.mulf %202, %203 : vector<2x2xf32>
    %205 = arith.addf %200, %204 : vector<2x2xf32>
    %c0_29 = arith.constant 0 : index
    %c0_30 = arith.constant 0 : index
    %206 = vector.load %arg7[%c0_29, %c0_30] : memref<2x1xf32, #tpu.memory_space<vmem>>, vector<2x1xf32>
    %207 = vector.broadcast %206 : vector<2x1xf32> to vector<2x2xf32>
    %208 = arith.addf %205, %207 : vector<2x2xf32>
    %209 = tpu.iota {dimensions = array<i32: 0>} : vector<2x2xi32>
    %c0_i32 = arith.constant 0 : i32
    %210 = vector.broadcast %c0_i32 : i32 to vector<2x2xi32>
    %211 = arith.cmpi eq, %209, %210 : vector<2x2xi32>
    %212 = arith.negf %208 : vector<2x2xf32>
    %213 = math.exp %212 : vector<2x2xf32>
    %cst_31 = arith.constant 1.000000e+00 : f32
    %214 = vector.broadcast %cst_31 : f32 to vector<2x2xf32>
    %215 = arith.addf %214, %213 : vector<2x2xf32>
    %216 = arith.divf %214, %215 : vector<2x2xf32>
    %217 = arith.select %211, %216, %208 : vector<2x2xi1>, vector<2x2xf32>
    %c0_32 = arith.constant 0 : index
    %c0_33 = arith.constant 0 : index
    %218 = vector.load %arg8[%c0_32, %c0_33] : memref<2x2xf32, #tpu.memory_space<vmem>>, vector<2x2xf32>
    tpu.vector_store %arg8[%c0_32, %c0_33], %217 {strides = array<i32>} : memref<2x2xf32, #tpu.memory_space<vmem>>, vector<2x2xf32>,
    return
  }
  func.func @transform_0(%arg0: i32) -> (i32, i32) {
    %c0_i32 = arith.constant 0 : i32
    %c0_i32_0 = arith.constant 0 : i32
    return %c0_i32, %arg0 : i32, i32
  }
  func.func @transform_1(%arg0: i32) -> (i32, i32) {
    %c0_i32 = arith.constant 0 : i32
    %c0_i32_0 = arith.constant 0 : i32
    %c0_i32_1 = arith.constant 0 : i32
    return %c0_i32, %c0_i32_0 : i32, i32
  }
  func.func @transform_2(%arg0: i32) -> (i32, i32) {
    %c0_i32 = arith.constant 0 : i32
    %c0_i32_0 = arith.constant 0 : i32
    %c0_i32_1 = arith.constant 0 : i32
    return %c0_i32, %c0_i32_0 : i32, i32
  }
  func.func @transform_3(%arg0: i32) -> (i32, i32) {
    %c0_i32 = arith.constant 0 : i32
    %c0_i32_0 = arith.constant 0 : i32
    %c0_i32_1 = arith.constant 0 : i32
    return %c0_i32, %c0_i32_0 : i32, i32
  }
  func.func @transform_4(%arg0: i32) -> (i32, i32) {
    %c0_i32 = arith.constant 0 : i32
    %c0_i32_0 = arith.constant 0 : i32
    %c0_i32_1 = arith.constant 0 : i32
    return %c0_i32, %c0_i32_0 : i32, i32
  }
  func.func @transform_5(%arg0: i32) -> (i32, i32) {
    %c0_i32 = arith.constant 0 : i32
    %c0_i32_0 = arith.constant 0 : i32
    %c0_i32_1 = arith.constant 0 : i32
    return %c0_i32, %c0_i32_0 : i32, i32
  }
  func.func @transform_6(%arg0: i32) -> (i32, i32) {
    %c0_i32 = arith.constant 0 : i32
    %c0_i32_0 = arith.constant 0 : i32
    %c0_i32_1 = arith.constant 0 : i32
    return %c0_i32, %c0_i32_0 : i32, i32
  }
  func.func @transform_7(%arg0: i32) -> (i32, i32) {
    %c0_i32 = arith.constant 0 : i32
    %c0_i32_0 = arith.constant 0 : i32
    return %c0_i32, %arg0 : i32, i32
  }
}

</mosaic_0001>

<llo_original>
// kernel: tpu_custom_call.1
$region0: #{tpu_custom_call.1}
  #allocation0 [shape = 'u32[]', space=smem, size = 0x4, offset = 0x4, fixed_abs, tag = 'smem constant byte address 0x4 - core index']
  #allocation1 [shape = 'u32[144,128]{1,0:T(1,128)}', space=vmem, size = 0x12000, scoped, tag = 'internal scratch']
  %s0 = inlined_call_operand.vmem [shape: f32[9,2], index: 0, kind: input, shape index: {}]
  %s1 = inlined_call_operand.vmem [shape: f32[128,1], index: 1, kind: input, shape index: {}]
  %s2 = inlined_call_operand.vmem [shape: f32[128,32], index: 2, kind: input, shape index: {}]
  %s3 = inlined_call_operand.vmem [shape: f32[128,1], index: 3, kind: input, shape index: {}]
  %s4 = inlined_call_operand.vmem [shape: f32[2,32], index: 4, kind: input, shape index: {}]
  %s5 = inlined_call_operand.vmem [shape: f32[2,1], index: 5, kind: input, shape index: {}]
  %s6 = inlined_call_operand.vmem [shape: f32[2,1], index: 6, kind: input, shape index: {}]
  %s7 = inlined_call_operand.hbm [shape: f32[2,2], index: 7, kind: output, shape index: {}]
  %s8 = sld [smem:[#allocation0]]
  $region38: #{tpu_custom_call.1} parent=0
    _
  %s10 = ssub.s32 1, %s8
  %s11 = scalar_select 0, %s10, %s8
  $region1: #{tpu_custom_call.1} parent=0
    #allocation2 [shape = 'u8[1024]{0}', space=vmem, size = 0x400, scoped, tag = 'output window, operand 0, single buffered']
    #allocation3 [shape = 's32[1]{0}', space=sflag, size = 0x4, scoped, tag = 'scoped memory for tpu_custom_call.1']
    %12 = vsyncpa [#allocation3], 0
    // Predicated region
    $region2: #{tpu_custom_call.1} parent=1 // pred_check
      _
    $region3: #{tpu_custom_call.1} parent=1 // pred_check_branch
      %14 = sbr.rel (0) target = $region5
    $region4: #{tpu_custom_call.1} parent=1 // pred_region
      _
    $region5: #{tpu_custom_call.1} parent=1 // pred_fallthru
      _
    // Predicated region
    $region6: #{tpu_custom_call.1} parent=1 // pred_check
      _
    $region7: #{tpu_custom_call.1} parent=1 // pred_check_branch
      %16 = sbr.rel (0) target = $region9
    $region8: #{tpu_custom_call.1} parent=1 // pred_region
      _
    $region9: #{tpu_custom_call.1} parent=1 // pred_fallthru
      _
    // Predicated region
    $region10: #{tpu_custom_call.1} parent=1 // pred_check
      _
    $region11: #{tpu_custom_call.1} parent=1 // pred_check_branch
      %18 = sbr.rel (0) target = $region13
    $region12: #{tpu_custom_call.1} parent=1 // pred_region
      _
    $region13: #{tpu_custom_call.1} parent=1 // pred_fallthru
      _
    // Predicated region
    $region14: #{tpu_custom_call.1} parent=1 // pred_check
      _
    $region15: #{tpu_custom_call.1} parent=1 // pred_check_branch
      %20 = sbr.rel (0) target = $region17
    $region16: #{tpu_custom_call.1} parent=1 // pred_region
      _
    $region17: #{tpu_custom_call.1} parent=1 // pred_fallthru
      _
    // Predicated region
    $region18: #{tpu_custom_call.1} parent=1 // pred_check
      _
    $region19: #{tpu_custom_call.1} parent=1 // pred_check_branch
      %22 = sbr.rel (0) target = $region21
    $region20: #{tpu_custom_call.1} parent=1 // pred_region
      _
    $region21: #{tpu_custom_call.1} parent=1 // pred_fallthru
      _
    // Predicated region
    $region22: #{tpu_custom_call.1} parent=1 // pred_check
      _
    $region23: #{tpu_custom_call.1} parent=1 // pred_check_branch
      %24 = sbr.rel (0) target = $region25
    $region24: #{tpu_custom_call.1} parent=1 // pred_region
      _
    $region25: #{tpu_custom_call.1} parent=1 // pred_fallthru
      _
    // Predicated region
    $region26: #{tpu_custom_call.1} parent=1 // pred_check
      _
    $region27: #{tpu_custom_call.1} parent=1 // pred_check_branch
      %26 = sbr.rel (0) target = $region29
    $region28: #{tpu_custom_call.1} parent=1 // pred_region
      _
    $region29: #{tpu_custom_call.1} parent=1 // pred_fallthru
      _
    %v27 = vld [vmem:[%s0] sm:$0xff]
    %v28 = vld [vmem:[%s0 + $0x8] sm:$0x1]
    %v29 = vld [vmem:[%s1] sm:$0xff]
    %v30 = vld [vmem:[%s1 + $0x8] sm:$0xff]
    %v31 = vld [vmem:[%s1 + $0x10] sm:$0xff]
    %v32 = vld [vmem:[%s1 + $0x18] sm:$0xff]
    %v33 = vld [vmem:[%s1 + $0x20] sm:$0xff]
    %v34 = vld [vmem:[%s1 + $0x28] sm:$0xff]
    %v35 = vld [vmem:[%s1 + $0x30] sm:$0xff]
    %v36 = vld [vmem:[%s1 + $0x38] sm:$0xff]
    %v37 = vld [vmem:[%s1 + $0x40] sm:$0xff]
    %v38 = vld [vmem:[%s1 + $0x48] sm:$0xff]
    %v39 = vld [vmem:[%s1 + $0x50] sm:$0xff]
    %v40 = vld [vmem:[%s1 + $0x58] sm:$0xff]
    %v41 = vld [vmem:[%s1 + $0x60] sm:$0xff]
    %v42 = vld [vmem:[%s1 + $0x68] sm:$0xff]
    %v43 = vld [vmem:[%s1 + $0x70] sm:$0xff]
    %v44 = vld [vmem:[%s1 + $0x78] sm:$0xff]
    %v45 = vld [vmem:[%s2] sm:$0xff]
    %v46 = vld [vmem:[%s2 + $0x8] sm:$0xff]
    %v47 = vld [vmem:[%s2 + $0x10] sm:$0xff]
    %v48 = vld [vmem:[%s2 + $0x18] sm:$0xff]
    %v49 = vld [vmem:[%s2 + $0x20] sm:$0xff]
    %v50 = vld [vmem:[%s2 + $0x28] sm:$0xff]
    %v51 = vld [vmem:[%s2 + $0x30] sm:$0xff]
    %v52 = vld [vmem:[%s2 + $0x38] sm:$0xff]
    %v53 = vld [vmem:[%s2 + $0x40] sm:$0xff]
    %v54 = vld [vmem:[%s2 + $0x48] sm:$0xff]
    %v55 = vld [vmem:[%s2 + $0x50] sm:$0xff]
    %v56 = vld [vmem:[%s2 + $0x58] sm:$0xff]
    %v57 = vld [vmem:[%s2 + $0x60] sm:$0xff]
    %v58 = vld [vmem:[%s2 + $0x68] sm:$0xff]
    %v59 = vld [vmem:[%s2 + $0x70] sm:$0xff]
    %v60 = vld [vmem:[%s2 + $0x78] sm:$0xff]
    %v61 = vld [vmem:[%s3] sm:$0xff]
    %v62 = vld [vmem:[%s3 + $0x8] sm:$0xff]
    %v63 = vld [vmem:[%s3 + $0x10] sm:$0xff]
    %v64 = vld [vmem:[%s3 + $0x18] sm:$0xff]
    %v65 = vld [vmem:[%s3 + $0x20] sm:$0xff]
    %v66 = vld [vmem:[%s3 + $0x28] sm:$0xff]
    %v67 = vld [vmem:[%s3 + $0x30] sm:$0xff]
    %v68 = vld [vmem:[%s3 + $0x38] sm:$0xff]
    %v69 = vld [vmem:[%s3 + $0x40] sm:$0xff]
    %v70 = vld [vmem:[%s3 + $0x48] sm:$0xff]
    %v71 = vld [vmem:[%s3 + $0x50] sm:$0xff]
    %v72 = vld [vmem:[%s3 + $0x58] sm:$0xff]
    %v73 = vld [vmem:[%s3 + $0x60] sm:$0xff]
    %v74 = vld [vmem:[%s3 + $0x68] sm:$0xff]
    %v75 = vld [vmem:[%s3 + $0x70] sm:$0xff]
    %v76 = vld [vmem:[%s3 + $0x78] sm:$0xff]
    %78 = vset.pattern.permute.xlu0 0
    %79 = vperm.xlu0 %78, %v29
    %v80 = vpop.permute.xlu0 %79
    %83 = vset.pattern.permute.xlu0 0
    %84 = vperm.xlu0 %83, %v30
    %v85 = vpop.permute.xlu0 %84
    %88 = vset.pattern.permute.xlu0 0
    %89 = vperm.xlu0 %88, %v31
    %v90 = vpop.permute.xlu0 %89
    %93 = vset.pattern.permute.xlu0 0
    %94 = vperm.xlu0 %93, %v32
    %v95 = vpop.permute.xlu0 %94
    %98 = vset.pattern.permute.xlu0 0
    %99 = vperm.xlu0 %98, %v33
    %v100 = vpop.permute.xlu0 %99
    %103 = vset.pattern.permute.xlu0 0
    %104 = vperm.xlu0 %103, %v34
    %v105 = vpop.permute.xlu0 %104
    %108 = vset.pattern.permute.xlu0 0
    %109 = vperm.xlu0 %108, %v35
    %v110 = vpop.permute.xlu0 %109
    %113 = vset.pattern.permute.xlu0 0
    %114 = vperm.xlu0 %113, %v36
    %v115 = vpop.permute.xlu0 %114
    %118 = vset.pattern.permute.xlu0 0
    %119 = vperm.xlu0 %118, %v37
    %v120 = vpop.permute.xlu0 %119
    %123 = vset.pattern.permute.xlu0 0
    %124 = vperm.xlu0 %123, %v38
    %v125 = vpop.permute.xlu0 %124
    %128 = vset.pattern.permute.xlu0 0
    %129 = vperm.xlu0 %128, %v39
    %v130 = vpop.permute.xlu0 %129
    %133 = vset.pattern.permute.xlu0 0
    %134 = vperm.xlu0 %133, %v40
    %v135 = vpop.permute.xlu0 %134
    %138 = vset.pattern.permute.xlu0 0
    %139 = vperm.xlu0 %138, %v41
    %v140 = vpop.permute.xlu0 %139
    %143 = vset.pattern.permute.xlu0 0
    %144 = vperm.xlu0 %143, %v42
    %v145 = vpop.permute.xlu0 %144
    %148 = vset.pattern.permute.xlu0 0
    %149 = vperm.xlu0 %148, %v43
    %v150 = vpop.permute.xlu0 %149
    %153 = vset.pattern.permute.xlu0 0
    %154 = vperm.xlu0 %153, %v44
    %v155 = vpop.permute.xlu0 %154
    %v157 = vlaneseq
    %v158 = vshrl.u32 %v157, 7
    %v159 = vsub.s32 0, %v158
    %v160 = vrot.slane %v27, %v159
    %v161 = vmul.f32 %v80, %v160
    %v162 = vmul.f32 %v85, %v160
    %v163 = vmul.f32 %v90, %v160
    %v164 = vmul.f32 %v95, %v160
    %v165 = vmul.f32 %v100, %v160
    %v166 = vmul.f32 %v105, %v160
    %v167 = vmul.f32 %v110, %v160
    %v168 = vmul.f32 %v115, %v160
    %v169 = vmul.f32 %v120, %v160
    %v170 = vmul.f32 %v125, %v160
    %v171 = vmul.f32 %v130, %v160
    %v172 = vmul.f32 %v135, %v160
    %v173 = vmul.f32 %v140, %v160
    %v174 = vmul.f32 %v145, %v160
    %v175 = vmul.f32 %v150, %v160
    %v176 = vmul.f32 %v155, %v160
    %vm177 = vcmask 261120
    %v179 = vsel %vm177, %v45, 0
    %v182 = vsel %vm177, %v46, 0
    %v185 = vsel %vm177, %v47, 0
    %v188 = vsel %vm177, %v48, 0
    %v191 = vsel %vm177, %v49, 0
    %v194 = vsel %vm177, %v50, 0
    %v197 = vsel %vm177, %v51, 0
    %v200 = vsel %vm177, %v52, 0
    %v203 = vsel %vm177, %v53, 0
    %v206 = vsel %vm177, %v54, 0
    %v209 = vsel %vm177, %v55, 0
    %v212 = vsel %vm177, %v56, 0
    %v215 = vsel %vm177, %v57, 0
    %v218 = vsel %vm177, %v58, 0
    %v221 = vsel %vm177, %v59, 0
    %v224 = vsel %vm177, %v60, 0
    %226 = vmatprep.subr.mxu0 0.0
    %227 = vmatpush1.msra.mxu0 0.0
    %228 = vmatprep.subr.mxu0 0.0
    %229 = vmatpush1.msra.mxu0 0.0
    %230 = vmatprep.subr.mxu0 0.0
    %231 = vmatpush1.msra.mxu0 0.0
    %232 = vmatprep.subr.mxu0 0.0
    %233 = vmatpush1.msra.mxu0 0.0
    %234 = vmatprep.subr.mxu0 0.0
    %235 = vmatpush1.msra.mxu0 0.0
    %236 = vmatprep.subr.mxu0 0.0
    %237 = vmatpush1.msra.mxu0 0.0
    %238 = vmatprep.subr.mxu0 0.0
    %239 = vmatpush1.msra.mxu0 0.0
    %240 = vmatprep.subr.mxu0 0.0
    %241 = vmatpush1.msra.mxu0 0.0
    %242 = vmatprep.subr.mxu0 0.0
    %243 = vmatpush1.msra.mxu0 0.0
    %244 = vmatprep.subr.mxu0 0.0
    %245 = vmatpush1.msra.mxu0 0.0
    %246 = vmatprep.subr.mxu0 0.0
    %247 = vmatpush1.msra.mxu0 0.0
    %248 = vmatprep.subr.mxu0 0.0
    %249 = vmatpush1.msra.mxu0 0.0
    %250 = vmatprep.subr.mxu0 0.0
    %251 = vmatpush1.msra.mxu0 0.0
    %252 = vmatprep.subr.mxu0 0.0
    %253 = vmatpush1.msra.mxu0 0.0
    %254 = vmatprep.subr.mxu0 0.0
    %255 = vmatpush1.msra.mxu0 0.0
    %256 = vmatprep.subr.mxu0 0.0
    %257 = vmatpush1.msra.mxu0 0.0
    %258 = vmatprep.subr.mxu0 0.0
    %259 = vmatpush1.msra.mxu0 0.0
    %260 = vmatprep.subr.mxu0 0.0
    %261 = vmatpush1.msra.mxu0 0.0
    %262 = vmatprep.subr.mxu0 0.0
    %263 = vmatpush1.msra.mxu0 0.0
    %264 = vmatprep.subr.mxu0 0.0
    %265 = vmatpush1.msra.mxu0 0.0
    %266 = vmatprep.subr.mxu0 0.0
    %267 = vmatpush1.msra.mxu0 0.0
    %268 = vmatprep.subr.mxu0 0.0
    %269 = vmatpush1.msra.mxu0 0.0
    %270 = vmatprep.subr.mxu0 0.0
    %271 = vmatpush1.msra.mxu0 0.0
    %272 = vmatprep.subr.mxu0 0.0
    %273 = vmatpush1.msra.mxu0 0.0
    %274 = vmatprep.subr.mxu0 0.0
    %275 = vmatpush1.msra.mxu0 0.0
    %276 = vmatprep.subr.mxu0 0.0
    %277 = vmatpush1.msra.mxu0 0.0
    %278 = vmatprep.subr.mxu0 0.0
    %279 = vmatpush1.msra.mxu0 0.0
    %280 = vmatprep.subr.mxu0 0.0
    %281 = vmatpush1.msra.mxu0 0.0
    %282 = vmatprep.subr.mxu0 0.0
    %283 = vmatpush1.msra.mxu0 0.0
    %284 = vmatprep.subr.mxu0 0.0
    %285 = vmatpush1.msra.mxu0 0.0
    %286 = vmatprep.subr.mxu0 0.0
    %287 = vmatpush1.msra.mxu0 0.0
    %288 = vmatprep.subr.mxu0 0.0
    %289 = vmatpush1.msra.mxu0 0.0
    %290 = vmatprep.mubr.f32.mxu0 0.0
    %291 = vmatmul.mubr.f32.gmra.mrb[0].mxu0 %v179
    %v292 = vpop.f32.mrb[0].mxu0
    %v293 = vadd.f32 %v161, %v292
    %v294 = vpop.f32.mrb[0].mxu0
    %295 = vmatprep.mubr.f32.mxu0 0.0
    %296 = vmatmul.mubr.f32.gmra.mrb[0].mxu0 %v182
    %v297 = vpop.f32.mrb[0].mxu0
    %v298 = vadd.f32 %v162, %v297
    %v299 = vpop.f32.mrb[0].mxu0
    %300 = vmatprep.mubr.f32.mxu0 0.0
    %301 = vmatmul.mubr.f32.gmra.mrb[0].mxu0 %v185
    %v302 = vpop.f32.mrb[0].mxu0
    %v303 = vadd.f32 %v163, %v302
    %v304 = vpop.f32.mrb[0].mxu0
    %305 = vmatprep.mubr.f32.mxu0 0.0
    %306 = vmatmul.mubr.f32.gmra.mrb[0].mxu0 %v188
    %v307 = vpop.f32.mrb[0].mxu0
    %v308 = vadd.f32 %v164, %v307
    %v309 = vpop.f32.mrb[0].mxu0
    %310 = vmatprep.mubr.f32.mxu0 0.0
    %311 = vmatmul.mubr.f32.gmra.mrb[0].mxu0 %v191
    %v312 = vpop.f32.mrb[0].mxu0
    %v313 = vadd.f32 %v165, %v312
    %v314 = vpop.f32.mrb[0].mxu0
    %315 = vmatprep.mubr.f32.mxu0 0.0
    %316 = vmatmul.mubr.f32.gmra.mrb[0].mxu0 %v194
    %v317 = vpop.f32.mrb[0].mxu0
    %v318 = vadd.f32 %v166, %v317
    %v319 = vpop.f32.mrb[0].mxu0
    %320 = vmatprep.mubr.f32.mxu0 0.0
    %321 = vmatmul.mubr.f32.gmra.mrb[0].mxu0 %v197
    %v322 = vpop.f32.mrb[0].mxu0
    %v323 = vadd.f32 %v167, %v322
    %v324 = vpop.f32.mrb[0].mxu0
    %325 = vmatprep.mubr.f32.mxu0 0.0
    %326 = vmatmul.mubr.f32.gmra.mrb[0].mxu0 %v200
    %v327 = vpop.f32.mrb[0].mxu0
    %v328 = vadd.f32 %v168, %v327
    %v329 = vpop.f32.mrb[0].mxu0
    %330 = vmatprep.mubr.f32.mxu0 0.0
    %331 = vmatmul.mubr.f32.gmra.mrb[0].mxu0 %v203
    %v332 = vpop.f32.mrb[0].mxu0
    %v333 = vadd.f32 %v169, %v332
    %v334 = vpop.f32.mrb[0].mxu0
    %335 = vmatprep.mubr.f32.mxu0 0.0
    %336 = vmatmul.mubr.f32.gmra.mrb[0].mxu0 %v206
    %v337 = vpop.f32.mrb[0].mxu0
    %v338 = vadd.f32 %v170, %v337
    %v339 = vpop.f32.mrb[0].mxu0
    %340 = vmatprep.mubr.f32.mxu0 0.0
    %341 = vmatmul.mubr.f32.gmra.mrb[0].mxu0 %v209
    %v342 = vpop.f32.mrb[0].mxu0
    %v343 = vadd.f32 %v171, %v342
    %v344 = vpop.f32.mrb[0].mxu0
    %345 = vmatprep.mubr.f32.mxu0 0.0
    %346 = vmatmul.mubr.f32.gmra.mrb[0].mxu0 %v212
    %v347 = vpop.f32.mrb[0].mxu0
    %v348 = vadd.f32 %v172, %v347
    %v349 = vpop.f32.mrb[0].mxu0
    %350 = vmatprep.mubr.f32.mxu0 0.0
    %351 = vmatmul.mubr.f32.gmra.mrb[0].mxu0 %v215
    %v352 = vpop.f32.mrb[0].mxu0
    %v353 = vadd.f32 %v173, %v352
    %v354 = vpop.f32.mrb[0].mxu0
    %355 = vmatprep.mubr.f32.mxu0 0.0
    %356 = vmatmul.mubr.f32.gmra.mrb[0].mxu0 %v218
    %v357 = vpop.f32.mrb[0].mxu0
    %v358 = vadd.f32 %v174, %v357
    %v359 = vpop.f32.mrb[0].mxu0
    %360 = vmatprep.mubr.f32.mxu0 0.0
    %361 = vmatmul.mubr.f32.gmra.mrb[0].mxu0 %v221
    %v362 = vpop.f32.mrb[0].mxu0
    %v363 = vadd.f32 %v175, %v362
    %v364 = vpop.f32.mrb[0].mxu0
    %365 = vmatprep.mubr.f32.mxu0 0.0
    %366 = vmatmul.mubr.f32.gmra.mrb[0].mxu0 %v224
    %v367 = vpop.f32.mrb[0].mxu0
    %v368 = vadd.f32 %v176, %v367
    %v369 = vpop.f32.mrb[0].mxu0
    %370 = vdwg.mxu0
    %372 = vset.pattern.permute.xlu0 0
    %373 = vperm.xlu0 %372, %v61
    %v374 = vpop.permute.xlu0 %373
    %377 = vset.pattern.permute.xlu0 0
    %378 = vperm.xlu0 %377, %v62
    %v379 = vpop.permute.xlu0 %378
    %382 = vset.pattern.permute.xlu0 0
    %383 = vperm.xlu0 %382, %v63
    %v384 = vpop.permute.xlu0 %383
    %387 = vset.pattern.permute.xlu0 0
    %388 = vperm.xlu0 %387, %v64
    %v389 = vpop.permute.xlu0 %388
    %392 = vset.pattern.permute.xlu0 0
    %393 = vperm.xlu0 %392, %v65
    %v394 = vpop.permute.xlu0 %393
    %397 = vset.pattern.permute.xlu0 0
    %398 = vperm.xlu0 %397, %v66
    %v399 = vpop.permute.xlu0 %398
    %402 = vset.pattern.permute.xlu0 0
    %403 = vperm.xlu0 %402, %v67
    %v404 = vpop.permute.xlu0 %403
    %407 = vset.pattern.permute.xlu0 0
    %408 = vperm.xlu0 %407, %v68
    %v409 = vpop.permute.xlu0 %408
    %412 = vset.pattern.permute.xlu0 0
    %413 = vperm.xlu0 %412, %v69
    %v414 = vpop.permute.xlu0 %413
    %417 = vset.pattern.permute.xlu0 0
    %418 = vperm.xlu0 %417, %v70
    %v419 = vpop.permute.xlu0 %418
    %422 = vset.pattern.permute.xlu0 0
    %423 = vperm.xlu0 %422, %v71
    %v424 = vpop.permute.xlu0 %423
    %427 = vset.pattern.permute.xlu0 0
    %428 = vperm.xlu0 %427, %v72
    %v429 = vpop.permute.xlu0 %428
    %432 = vset.pattern.permute.xlu0 0
    %433 = vperm.xlu0 %432, %v73
    %v434 = vpop.permute.xlu0 %433
    %437 = vset.pattern.permute.xlu0 0
    %438 = vperm.xlu0 %437, %v74
    %v439 = vpop.permute.xlu0 %438
    %442 = vset.pattern.permute.xlu0 0
    %443 = vperm.xlu0 %442, %v75
    %v444 = vpop.permute.xlu0 %443
    %447 = vset.pattern.permute.xlu0 0
    %448 = vperm.xlu0 %447, %v76
    %v449 = vpop.permute.xlu0 %448
    %v451 = vadd.f32 %v293, %v374
    %v452 = vadd.f32 %v298, %v379
    %v453 = vadd.f32 %v303, %v384
    %v454 = vadd.f32 %v308, %v389
    %v455 = vadd.f32 %v313, %v394
    %v456 = vadd.f32 %v318, %v399
    %v457 = vadd.f32 %v323, %v404
    %v458 = vadd.f32 %v328, %v409
    %v459 = vadd.f32 %v333, %v414
    %v460 = vadd.f32 %v338, %v419
    %v461 = vadd.f32 %v343, %v424
    %v462 = vadd.f32 %v348, %v429
    %v463 = vadd.f32 %v353, %v434
    %v464 = vadd.f32 %v358, %v439
    %v465 = vadd.f32 %v363, %v444
    %v466 = vadd.f32 %v368, %v449
    %v467 = vxor.u32 %v451, 2147483648
    %v468 = vxor.u32 %v452, 2147483648
    %v469 = vxor.u32 %v453, 2147483648
    %v470 = vxor.u32 %v454, 2147483648
    %v471 = vxor.u32 %v455, 2147483648
    %v472 = vxor.u32 %v456, 2147483648
    %v473 = vxor.u32 %v457, 2147483648
    %v474 = vxor.u32 %v458, 2147483648
    %v475 = vxor.u32 %v459, 2147483648
    %v476 = vxor.u32 %v460, 2147483648
    %v477 = vxor.u32 %v461, 2147483648
    %v478 = vxor.u32 %v462, 2147483648
    %v479 = vmul.f32 %v467, 1.442695
    %v480 = vpow.pop %v479
    %v481 = vmul.f32 %v468, 1.442695
    %v482 = vpow.pop %v481
    %v483 = vmul.f32 %v469, 1.442695
    %v484 = vpow.pop %v483
    %v485 = vmul.f32 %v470, 1.442695
    %v486 = vpow.pop %v485
    %v487 = vmul.f32 %v471, 1.442695
    %v488 = vpow.pop %v487
    %v489 = vmul.f32 %v472, 1.442695
    %v490 = vpow.pop %v489
    %v491 = vmul.f32 %v473, 1.442695
    %v492 = vpow.pop %v491
    %v493 = vmul.f32 %v474, 1.442695
    %v494 = vpow.pop %v493
    %v495 = vmul.f32 %v475, 1.442695
    %v496 = vpow.pop %v495
    %v497 = vmul.f32 %v476, 1.442695
    %v498 = vpow.pop %v497
    %v499 = vmul.f32 %v477, 1.442695
    %v500 = vpow.pop %v499
    %v501 = vmul.f32 %v478, 1.442695
    %v502 = vpow.pop %v501
    %v503 = vadd.f32 %v480, 1.0
    %v504 = vadd.f32 %v482, 1.0
    %v505 = vadd.f32 %v484, 1.0
    %v506 = vadd.f32 %v486, 1.0
    %v507 = vadd.f32 %v488, 1.0
    %v508 = vadd.f32 %v490, 1.0
    %v509 = vadd.f32 %v492, 1.0
    %v510 = vadd.f32 %v494, 1.0
    %v511 = vadd.f32 %v496, 1.0
    %v512 = vadd.f32 %v498, 1.0
    %v513 = vadd.f32 %v500, 1.0
    %v514 = vadd.f32 %v502, 1.0
    %v515 = vrcp.pop %v503
    %v516 = vmul.f32 1.0, %v515
    %v517 = vrcp.pop %v504
    %v518 = vmul.f32 1.0, %v517
    %v519 = vrcp.pop %v505
    %v520 = vmul.f32 1.0, %v519
    %v521 = vrcp.pop %v506
    %v522 = vmul.f32 1.0, %v521
    %v523 = vrcp.pop %v507
    %v524 = vmul.f32 1.0, %v523
    %v525 = vrcp.pop %v508
    %v526 = vmul.f32 1.0, %v525
    %v527 = vrcp.pop %v509
    %v528 = vmul.f32 1.0, %v527
    %v529 = vrcp.pop %v510
    %v530 = vmul.f32 1.0, %v529
    %v531 = vrcp.pop %v511
    %v532 = vmul.f32 1.0, %v531
    %v533 = vrcp.pop %v512
    %v534 = vmul.f32 1.0, %v533
    %v535 = vrcp.pop %v513
    %v536 = vmul.f32 1.0, %v535
    %v537 = vrcp.pop %v514
    %v538 = vmul.f32 1.0, %v537
    %v539 = vtanh.pop %v463
    %v540 = vtanh.pop %v464
    %v541 = vtanh.pop %v465
    %v542 = vtanh.pop %v466
    %v543 = vmul.f32 %v524, 0.0
    %v544 = vmul.f32 %v526, 0.0
    %v545 = vmul.f32 %v528, 0.0
    %v546 = vmul.f32 %v530, 0.0
    %v547 = vmul.f32 %v516, %v539
    %v548 = vmul.f32 %v518, %v540
    %v549 = vmul.f32 %v520, %v541
    %v550 = vmul.f32 %v522, %v542
    %v551 = vadd.f32 %v543, %v547
    %v552 = vadd.f32 %v544, %v548
    %v553 = vadd.f32 %v545, %v549
    %v554 = vadd.f32 %v546, %v550
    %v555 = vtanh.pop %v551
    %v556 = vtanh.pop %v552
    %v557 = vtanh.pop %v553
    %v558 = vtanh.pop %v554
    %v559 = vmul.f32 %v532, %v555
    %v560 = vmul.f32 %v534, %v556
    %v561 = vmul.f32 %v536, %v557
    %v562 = vmul.f32 %v538, %v558
    %v563 = vlaneseq
    %v564 = vshrl.u32 %v563, 7
    %v565 = vsub.s32 1, %v564
    %v566 = vrot.slane %v27, %v565
    %v567 = vmul.f32 %v80, %v566
    %v568 = vmul.f32 %v85, %v566
    %v569 = vmul.f32 %v90, %v566
    %v570 = vmul.f32 %v95, %v566
    %v571 = vmul.f32 %v100, %v566
    %v572 = vmul.f32 %v105, %v566
    %v573 = vmul.f32 %v110, %v566
    %v574 = vmul.f32 %v115, %v566
    %v575 = vmul.f32 %v120, %v566
    %v576 = vmul.f32 %v125, %v566
    %v577 = vmul.f32 %v130, %v566
    %v578 = vmul.f32 %v135, %v566
    %v579 = vmul.f32 %v140, %v566
    %v580 = vmul.f32 %v145, %v566
    %v581 = vmul.f32 %v150, %v566
    %v582 = vmul.f32 %v155, %v566
    %583 = vmatprep.subr.mxu0 0.0
    %584 = vmatpush1.msra.mxu0 %v559
    %585 = vmatprep.subr.mxu0 0.0
    %586 = vmatpush1.msra.mxu0 %v560
    %587 = vmatprep.subr.mxu0 0.0
    %588 = vmatpush1.msra.mxu0 %v561
    %589 = vmatprep.subr.mxu0 0.0
    %590 = vmatpush1.msra.mxu0 %v562
    %591 = vmatprep.subr.mxu0 0.0
    %592 = vmatpush1.msra.mxu0 0.0
    %593 = vmatprep.subr.mxu0 0.0
    %594 = vmatpush1.msra.mxu0 0.0
    %595 = vmatprep.subr.mxu0 0.0
    %596 = vmatpush1.msra.mxu0 0.0
    %597 = vmatprep.subr.mxu0 0.0
    %598 = vmatpush1.msra.mxu0 0.0
    %599 = vmatprep.subr.mxu0 0.0
    %600 = vmatpush1.msra.mxu0 0.0
    %601 = vmatprep.subr.mxu0 0.0
    %602 = vmatpush1.msra.mxu0 0.0
    %603 = vmatprep.subr.mxu0 0.0
    %604 = vmatpush1.msra.mxu0 0.0
    %605 = vmatprep.subr.mxu0 0.0
    %606 = vmatpush1.msra.mxu0 0.0
    %607 = vmatprep.subr.mxu0 0.0
    %608 = vmatpush1.msra.mxu0 0.0
    %609 = vmatprep.subr.mxu0 0.0
    %610 = vmatpush1.msra.mxu0 0.0
    %611 = vmatprep.subr.mxu0 0.0
    %612 = vmatpush1.msra.mxu0 0.0
    %613 = vmatprep.subr.mxu0 0.0
    %614 = vmatpush1.msra.mxu0 0.0
    %615 = vmatprep.subr.mxu0 0.0
    %616 = vmatpush1.msra.mxu0 0.0
    %617 = vmatprep.subr.mxu0 0.0
    %618 = vmatpush1.msra.mxu0 0.0
    %619 = vmatprep.subr.mxu0 0.0
    %620 = vmatpush1.msra.mxu0 0.0
    %621 = vmatprep.subr.mxu0 0.0
    %622 = vmatpush1.msra.mxu0 0.0
    %623 = vmatprep.subr.mxu0 0.0
    %624 = vmatpush1.msra.mxu0 0.0
    %625 = vmatprep.subr.mxu0 0.0
    %626 = vmatpush1.msra.mxu0 0.0
    %627 = vmatprep.subr.mxu0 0.0
    %628 = vmatpush1.msra.mxu0 0.0
    %629 = vmatprep.subr.mxu0 0.0
    %630 = vmatpush1.msra.mxu0 0.0
    %631 = vmatprep.subr.mxu0 0.0
    %632 = vmatpush1.msra.mxu0 0.0
    %633 = vmatprep.subr.mxu0 0.0
    %634 = vmatpush1.msra.mxu0 0.0
    %635 = vmatprep.subr.mxu0 0.0
    %636 = vmatpush1.msra.mxu0 0.0
    %637 = vmatprep.subr.mxu0 0.0
    %638 = vmatpush1.msra.mxu0 0.0
    %639 = vmatprep.subr.mxu0 0.0
    %640 = vmatpush1.msra.mxu0 0.0
    %641 = vmatprep.subr.mxu0 0.0
    %642 = vmatpush1.msra.mxu0 0.0
    %643 = vmatprep.subr.mxu0 0.0
    %644 = vmatpush1.msra.mxu0 0.0
    %645 = vmatprep.subr.mxu0 0.0
    %646 = vmatpush1.msra.mxu0 0.0
    %647 = vmatprep.mubr.f32.mxu0 0.0
    %648 = vmatmul.mubr.f32.gmra.mrb[0].mxu0 %v179
    %v649 = vpop.f32.mrb[0].mxu0
    %v650 = vadd.f32 %v567, %v649
    %v651 = vpop.f32.mrb[0].mxu0
    %652 = vmatprep.mubr.f32.mxu0 0.0
    %653 = vmatmul.mubr.f32.gmra.mrb[0].mxu0 %v182
    %v654 = vpop.f32.mrb[0].mxu0
    %v655 = vadd.f32 %v568, %v654
    %v656 = vpop.f32.mrb[0].mxu0
    %657 = vmatprep.mubr.f32.mxu0 0.0
    %658 = vmatmul.mubr.f32.gmra.mrb[0].mxu0 %v185
    %v659 = vpop.f32.mrb[0].mxu0
    %v660 = vadd.f32 %v569, %v659
    %v661 = vpop.f32.mrb[0].mxu0
    %662 = vmatprep.mubr.f32.mxu0 0.0
    %663 = vmatmul.mubr.f32.gmra.mrb[0].mxu0 %v188
    %v664 = vpop.f32.mrb[0].mxu0
    %v665 = vadd.f32 %v570, %v664
    %v666 = vpop.f32.mrb[0].mxu0
    %667 = vmatprep.mubr.f32.mxu0 0.0
    %668 = vmatmul.mubr.f32.gmra.mrb[0].mxu0 %v191
    %v669 = vpop.f32.mrb[0].mxu0
    %v670 = vadd.f32 %v571, %v669
    %v671 = vpop.f32.mrb[0].mxu0
    %672 = vmatprep.mubr.f32.mxu0 0.0
    %673 = vmatmul.mubr.f32.gmra.mrb[0].mxu0 %v194
    %v674 = vpop.f32.mrb[0].mxu0
    %v675 = vadd.f32 %v572, %v674
    %v676 = vpop.f32.mrb[0].mxu0
    %677 = vmatprep.mubr.f32.mxu0 0.0
    %678 = vmatmul.mubr.f32.gmra.mrb[0].mxu0 %v197
    %v679 = vpop.f32.mrb[0].mxu0
    %v680 = vadd.f32 %v573, %v679
    %v681 = vpop.f32.mrb[0].mxu0
    %682 = vmatprep.mubr.f32.mxu0 0.0
    %683 = vmatmul.mubr.f32.gmra.mrb[0].mxu0 %v200
    %v684 = vpop.f32.mrb[0].mxu0
    %v685 = vadd.f32 %v574, %v684
    %v686 = vpop.f32.mrb[0].mxu0
    %687 = vmatprep.mubr.f32.mxu0 0.0
    %688 = vmatmul.mubr.f32.gmra.mrb[0].mxu0 %v203
    %v689 = vpop.f32.mrb[0].mxu0
    %v690 = vadd.f32 %v575, %v689
    %v691 = vpop.f32.mrb[0].mxu0
    %692 = vmatprep.mubr.f32.mxu0 0.0
    %693 = vmatmul.mubr.f32.gmra.mrb[0].mxu0 %v206
    %v694 = vpop.f32.mrb[0].mxu0
    %v695 = vadd.f32 %v576, %v694
    %v696 = vpop.f32.mrb[0].mxu0
    %697 = vmatprep.mubr.f32.mxu0 0.0
    %698 = vmatmul.mubr.f32.gmra.mrb[0].mxu0 %v209
    %v699 = vpop.f32.mrb[0].mxu0
    %v700 = vadd.f32 %v577, %v699
    %v701 = vpop.f32.mrb[0].mxu0
    %702 = vmatprep.mubr.f32.mxu0 0.0
    %703 = vmatmul.mubr.f32.gmra.mrb[0].mxu0 %v212
    %v704 = vpop.f32.mrb[0].mxu0
    %v705 = vadd.f32 %v578, %v704
    %v706 = vpop.f32.mrb[0].mxu0
    %707 = vmatprep.mubr.f32.mxu0 0.0
    %708 = vmatmul.mubr.f32.gmra.mrb[0].mxu0 %v215
    %v709 = vpop.f32.mrb[0].mxu0
    %v710 = vadd.f32 %v579, %v709
    %v711 = vpop.f32.mrb[0].mxu0
    %712 = vmatprep.mubr.f32.mxu0 0.0
    %713 = vmatmul.mubr.f32.gmra.mrb[0].mxu0 %v218
    %v714 = vpop.f32.mrb[0].mxu0
    %v715 = vadd.f32 %v580, %v714
    %v716 = vpop.f32.mrb[0].mxu0
    %717 = vmatprep.mubr.f32.mxu0 0.0
    %718 = vmatmul.mubr.f32.gmra.mrb[0].mxu0 %v221
    %v719 = vpop.f32.mrb[0].mxu0
    %v720 = vadd.f32 %v581, %v719
    %v721 = vpop.f32.mrb[0].mxu0
    %722 = vmatprep.mubr.f32.mxu0 0.0
    %723 = vmatmul.mubr.f32.gmra.mrb[0].mxu0 %v224
    %v724 = vpop.f32.mrb[0].mxu0
    %v725 = vadd.f32 %v582, %v724
    %v726 = vpop.f32.mrb[0].mxu0
    %727 = vdwg.mxu0
    %v728 = vadd.f32 %v650, %v374
    %v729 = vadd.f32 %v655, %v379
    %v730 = vadd.f32 %v660, %v384
    %v731 = vadd.f32 %v665, %v389
    %v732 = vadd.f32 %v670, %v394
    %v733 = vadd.f32 %v675, %v399
    %v734 = vadd.f32 %v680, %v404
    %v735 = vadd.f32 %v685, %v409
    %v736 = vadd.f32 %v690, %v414
    %v737 = vadd.f32 %v695, %v419
    %v738 = vadd.f32 %v700, %v424
    %v739 = vadd.f32 %v705, %v429
    %v740 = vadd.f32 %v710, %v434
    %v741 = vadd.f32 %v715, %v439
    %v742 = vadd.f32 %v720, %v444
    %v743 = vadd.f32 %v725, %v449
    %v744 = vxor.u32 %v728, 2147483648
    %v745 = vxor.u32 %v729, 2147483648
    %v746 = vxor.u32 %v730, 2147483648
    %v747 = vxor.u32 %v731, 2147483648
    %v748 = vxor.u32 %v732, 2147483648
    %v749 = vxor.u32 %v733, 2147483648
    %v750 = vxor.u32 %v734, 2147483648
    %v751 = vxor.u32 %v735, 2147483648
    %v752 = vxor.u32 %v736, 2147483648
    %v753 = vxor.u32 %v737, 2147483648
    %v754 = vxor.u32 %v738, 2147483648
    %v755 = vxor.u32 %v739, 2147483648
    %v756 = vmul.f32 %v744, 1.442695
    %v757 = vpow.pop %v756
    %v758 = vmul.f32 %v745, 1.442695
    %v759 = vpow.pop %v758
    %v760 = vmul.f32 %v746, 1.442695
    %v761 = vpow.pop %v760
    %v762 = vmul.f32 %v747, 1.442695
    %v763 = vpow.pop %v762
    %v764 = vmul.f32 %v748, 1.442695
    %v765 = vpow.pop %v764
    %v766 = vmul.f32 %v749, 1.442695
    %v767 = vpow.pop %v766
    %v768 = vmul.f32 %v750, 1.442695
    %v769 = vpow.pop %v768
    %v770 = vmul.f32 %v751, 1.442695
    %v771 = vpow.pop %v770
    %v772 = vmul.f32 %v752, 1.442695
    %v773 = vpow.pop %v772
    %v774 = vmul.f32 %v753, 1.442695
    %v775 = vpow.pop %v774
    %v776 = vmul.f32 %v754, 1.442695
    %v777 = vpow.pop %v776
    %v778 = vmul.f32 %v755, 1.442695
    %v779 = vpow.pop %v778
    %v780 = vadd.f32 %v757, 1.0
    %v781 = vadd.f32 %v759, 1.0
    %v782 = vadd.f32 %v761, 1.0
    %v783 = vadd.f32 %v763, 1.0
    %v784 = vadd.f32 %v765, 1.0
    %v785 = vadd.f32 %v767, 1.0
    %v786 = vadd.f32 %v769, 1.0
    %v787 = vadd.f32 %v771, 1.0
    %v788 = vadd.f32 %v773, 1.0
    %v789 = vadd.f32 %v775, 1.0
    %v790 = vadd.f32 %v777, 1.0
    %v791 = vadd.f32 %v779, 1.0
    %v792 = vrcp.pop %v780
    %v793 = vmul.f32 1.0, %v792
    %v794 = vrcp.pop %v781
    %v795 = vmul.f32 1.0, %v794
    %v796 = vrcp.pop %v782
    %v797 = vmul.f32 1.0, %v796
    %v798 = vrcp.pop %v783
    %v799 = vmul.f32 1.0, %v798
    %v800 = vrcp.pop %v784
    %v801 = vmul.f32 1.0, %v800
    %v802 = vrcp.pop %v785
    %v803 = vmul.f32 1.0, %v802
    %v804 = vrcp.pop %v786
    %v805 = vmul.f32 1.0, %v804
    %v806 = vrcp.pop %v787
    %v807 = vmul.f32 1.0, %v806
    %v808 = vrcp.pop %v788
    %v809 = vmul.f32 1.0, %v808
    %v810 = vrcp.pop %v789
    %v811 = vmul.f32 1.0, %v810
    %v812 = vrcp.pop %v790
    %v813 = vmul.f32 1.0, %v812
    %v814 = vrcp.pop %v791
    %v815 = vmul.f32 1.0, %v814
    %v816 = vtanh.pop %v740
    %v817 = vtanh.pop %v741
    %v818 = vtanh.pop %v742
    %v819 = vtanh.pop %v743
    %v820 = vmul.f32 %v801, %v551
    %v821 = vmul.f32 %v803, %v552
    %v822 = vmul.f32 %v805, %v553
    %v823 = vmul.f32 %v807, %v554
    %v824 = vmul.f32 %v793, %v816
    %v825 = vmul.f32 %v795, %v817
    %v826 = vmul.f32 %v797, %v818
    %v827 = vmul.f32 %v799, %v819
    %v828 = vadd.f32 %v820, %v824
    %v829 = vadd.f32 %v821, %v825
    %v830 = vadd.f32 %v822, %v826
    %v831 = vadd.f32 %v823, %v827
    %v832 = vtanh.pop %v828
    %v833 = vtanh.pop %v829
    %v834 = vtanh.pop %v830
    %v835 = vtanh.pop %v831
    %v836 = vmul.f32 %v809, %v832
    %v837 = vmul.f32 %v811, %v833
    %v838 = vmul.f32 %v813, %v834
    %v839 = vmul.f32 %v815, %v835
    %v840 = vlaneseq
    %v841 = vshrl.u32 %v840, 7
    %v842 = vsub.s32 2, %v841
    %v843 = vrot.slane %v27, %v842
    %v844 = vmul.f32 %v80, %v843
    %v845 = vmul.f32 %v85, %v843
    %v846 = vmul.f32 %v90, %v843
    %v847 = vmul.f32 %v95, %v843
    %v848 = vmul.f32 %v100, %v843
    %v849 = vmul.f32 %v105, %v843
    %v850 = vmul.f32 %v110, %v843
    %v851 = vmul.f32 %v115, %v843
    %v852 = vmul.f32 %v120, %v843
    %v853 = vmul.f32 %v125, %v843
    %v854 = vmul.f32 %v130, %v843
    %v855 = vmul.f32 %v135, %v843
    %v856 = vmul.f32 %v140, %v843
    %v857 = vmul.f32 %v145, %v843
    %v858 = vmul.f32 %v150, %v843
    %v859 = vmul.f32 %v155, %v843
    %860 = vmatprep.subr.mxu0 0.0
    %861 = vmatpush1.msra.mxu0 %v836
    %862 = vmatprep.subr.mxu0 0.0
    %863 = vmatpush1.msra.mxu0 %v837
    %864 = vmatprep.subr.mxu0 0.0
    %865 = vmatpush1.msra.mxu0 %v838
    %866 = vmatprep.subr.mxu0 0.0
    %867 = vmatpush1.msra.mxu0 %v839
    %868 = vmatprep.subr.mxu0 0.0
    %869 = vmatpush1.msra.mxu0 0.0
    %870 = vmatprep.subr.mxu0 0.0
    %871 = vmatpush1.msra.mxu0 0.0
    %872 = vmatprep.subr.mxu0 0.0
    %873 = vmatpush1.msra.mxu0 0.0
    %874 = vmatprep.subr.mxu0 0.0
    %875 = vmatpush1.msra.mxu0 0.0
    %876 = vmatprep.subr.mxu0 0.0
    %877 = vmatpush1.msra.mxu0 0.0
    %878 = vmatprep.subr.mxu0 0.0
    %879 = vmatpush1.msra.mxu0 0.0
    %880 = vmatprep.subr.mxu0 0.0
    %881 = vmatpush1.msra.mxu0 0.0
    %882 = vmatprep.subr.mxu0 0.0
    %883 = vmatpush1.msra.mxu0 0.0
    %884 = vmatprep.subr.mxu0 0.0
    %885 = vmatpush1.msra.mxu0 0.0
    %886 = vmatprep.subr.mxu0 0.0
    %887 = vmatpush1.msra.mxu0 0.0
    %888 = vmatprep.subr.mxu0 0.0
    %889 = vmatpush1.msra.mxu0 0.0
    %890 = vmatprep.subr.mxu0 0.0
    %891 = vmatpush1.msra.mxu0 0.0
    %892 = vmatprep.subr.mxu0 0.0
    %893 = vmatpush1.msra.mxu0 0.0
    %894 = vmatprep.subr.mxu0 0.0
    %895 = vmatpush1.msra.mxu0 0.0
    %896 = vmatprep.subr.mxu0 0.0
    %897 = vmatpush1.msra.mxu0 0.0
    %898 = vmatprep.subr.mxu0 0.0
    %899 = vmatpush1.msra.mxu0 0.0
    %900 = vmatprep.subr.mxu0 0.0
    %901 = vmatpush1.msra.mxu0 0.0
    %902 = vmatprep.subr.mxu0 0.0
    %903 = vmatpush1.msra.mxu0 0.0
    %904 = vmatprep.subr.mxu0 0.0
    %905 = vmatpush1.msra.mxu0 0.0
    %906 = vmatprep.subr.mxu0 0.0
    %907 = vmatpush1.msra.mxu0 0.0
    %908 = vmatprep.subr.mxu0 0.0
    %909 = vmatpush1.msra.mxu0 0.0
    %910 = vmatprep.subr.mxu0 0.0
    %911 = vmatpush1.msra.mxu0 0.0
    %912 = vmatprep.subr.mxu0 0.0
    %913 = vmatpush1.msra.mxu0 0.0
    %914 = vmatprep.subr.mxu0 0.0
    %915 = vmatpush1.msra.mxu0 0.0
    %916 = vmatprep.subr.mxu0 0.0
    %917 = vmatpush1.msra.mxu0 0.0
    %918 = vmatprep.subr.mxu0 0.0
    %919 = vmatpush1.msra.mxu0 0.0
    %920 = vmatprep.subr.mxu0 0.0
    %921 = vmatpush1.msra.mxu0 0.0
    %922 = vmatprep.subr.mxu0 0.0
    %923 = vmatpush1.msra.mxu0 0.0
    %924 = vmatprep.mubr.f32.mxu0 0.0
    %925 = vmatmul.mubr.f32.gmra.mrb[0].mxu0 %v179
    %v926 = vpop.f32.mrb[0].mxu0
    %v927 = vadd.f32 %v844, %v926
    %v928 = vpop.f32.mrb[0].mxu0
    %929 = vmatprep.mubr.f32.mxu0 0.0
    %930 = vmatmul.mubr.f32.gmra.mrb[0].mxu0 %v182
    %v931 = vpop.f32.mrb[0].mxu0
    %v932 = vadd.f32 %v845, %v931
    %v933 = vpop.f32.mrb[0].mxu0
    %934 = vmatprep.mubr.f32.mxu0 0.0
    %935 = vmatmul.mubr.f32.gmra.mrb[0].mxu0 %v185
    %v936 = vpop.f32.mrb[0].mxu0
    %v937 = vadd.f32 %v846, %v936
    %v938 = vpop.f32.mrb[0].mxu0
    %939 = vmatprep.mubr.f32.mxu0 0.0
    %940 = vmatmul.mubr.f32.gmra.mrb[0].mxu0 %v188
    %v941 = vpop.f32.mrb[0].mxu0
    %v942 = vadd.f32 %v847, %v941
    %v943 = vpop.f32.mrb[0].mxu0
    %944 = vmatprep.mubr.f32.mxu0 0.0
    %945 = vmatmul.mubr.f32.gmra.mrb[0].mxu0 %v191
    %v946 = vpop.f32.mrb[0].mxu0
    %v947 = vadd.f32 %v848, %v946
    %v948 = vpop.f32.mrb[0].mxu0
    %949 = vmatprep.mubr.f32.mxu0 0.0
    %950 = vmatmul.mubr.f32.gmra.mrb[0].mxu0 %v194
    %v951 = vpop.f32.mrb[0].mxu0
    %v952 = vadd.f32 %v849, %v951
    %v953 = vpop.f32.mrb[0].mxu0
    %954 = vmatprep.mubr.f32.mxu0 0.0
    %955 = vmatmul.mubr.f32.gmra.mrb[0].mxu0 %v197
    %v956 = vpop.f32.mrb[0].mxu0
    %v957 = vadd.f32 %v850, %v956
    %v958 = vpop.f32.mrb[0].mxu0
    %959 = vmatprep.mubr.f32.mxu0 0.0
    %960 = vmatmul.mubr.f32.gmra.mrb[0].mxu0 %v200
    %v961 = vpop.f32.mrb[0].mxu0
    %v962 = vadd.f32 %v851, %v961
    %v963 = vpop.f32.mrb[0].mxu0
    %964 = vmatprep.mubr.f32.mxu0 0.0
    %965 = vmatmul.mubr.f32.gmra.mrb[0].mxu0 %v203
    %v966 = vpop.f32.mrb[0].mxu0
    %v967 = vadd.f32 %v852, %v966
    %v968 = vpop.f32.mrb[0].mxu0
    %969 = vmatprep.mubr.f32.mxu0 0.0
    %970 = vmatmul.mubr.f32.gmra.mrb[0].mxu0 %v206
    %v971 = vpop.f32.mrb[0].mxu0
    %v972 = vadd.f32 %v853, %v971
    %v973 = vpop.f32.mrb[0].mxu0
    %974 = vmatprep.mubr.f32.mxu0 0.0
    %975 = vmatmul.mubr.f32.gmra.mrb[0].mxu0 %v209
    %v976 = vpop.f32.mrb[0].mxu0
    %v977 = vadd.f32 %v854, %v976
    %v978 = vpop.f32.mrb[0].mxu0
    %979 = vmatprep.mubr.f32.mxu0 0.0
    %980 = vmatmul.mubr.f32.gmra.mrb[0].mxu0 %v212
    %v981 = vpop.f32.mrb[0].mxu0
    %v982 = vadd.f32 %v855, %v981
    %v983 = vpop.f32.mrb[0].mxu0
    %984 = vmatprep.mubr.f32.mxu0 0.0
    %985 = vmatmul.mubr.f32.gmra.mrb[0].mxu0 %v215
    %v986 = vpop.f32.mrb[0].mxu0
    %v987 = vadd.f32 %v856, %v986
    %v988 = vpop.f32.mrb[0].mxu0
    %989 = vmatprep.mubr.f32.mxu0 0.0
    %990 = vmatmul.mubr.f32.gmra.mrb[0].mxu0 %v218
    %v991 = vpop.f32.mrb[0].mxu0
    %v992 = vadd.f32 %v857, %v991
    %v993 = vpop.f32.mrb[0].mxu0
    %994 = vmatprep.mubr.f32.mxu0 0.0
    %995 = vmatmul.mubr.f32.gmra.mrb[0].mxu0 %v221
    %v996 = vpop.f32.mrb[0].mxu0
    %v997 = vadd.f32 %v858, %v996
    %v998 = vpop.f32.mrb[0].mxu0
    %999 = vmatprep.mubr.f32.mxu0 0.0
    %1000 = vmatmul.mubr.f32.gmra.mrb[0].mxu0 %v224
    %v1001 = vpop.f32.mrb[0].mxu0
    %v1002 = vadd.f32 %v859, %v1001
    %v1003 = vpop.f32.mrb[0].mxu0
    %1004 = vdwg.mxu0
    %v1005 = vadd.f32 %v927, %v374
    %v1006 = vadd.f32 %v932, %v379
    %v1007 = vadd.f32 %v937, %v384
    %v1008 = vadd.f32 %v942, %v389
    %v1009 = vadd.f32 %v947, %v394
    %v1010 = vadd.f32 %v952, %v399
    %v1011 = vadd.f32 %v957, %v404
    %v1012 = vadd.f32 %v962, %v409
    %v1013 = vadd.f32 %v967, %v414
    %v1014 = vadd.f32 %v972, %v419
    %v1015 = vadd.f32 %v977, %v424
    %v1016 = vadd.f32 %v982, %v429
    %v1017 = vadd.f32 %v987, %v434
    %v1018 = vadd.f32 %v992, %v439
    %v1019 = vadd.f32 %v997, %v444
    %v1020 = vadd.f32 %v1002, %v449
    %v1021 = vxor.u32 %v1005, 2147483648
    %v1022 = vxor.u32 %v1006, 2147483648
    %v1023 = vxor.u32 %v1007, 2147483648
    %v1024 = vxor.u32 %v1008, 2147483648
    %v1025 = vxor.u32 %v1009, 2147483648
    %v1026 = vxor.u32 %v1010, 2147483648
    %v1027 = vxor.u32 %v1011, 2147483648
    %v1028 = vxor.u32 %v1012, 2147483648
    %v1029 = vxor.u32 %v1013, 2147483648
    %v1030 = vxor.u32 %v1014, 2147483648
    %v1031 = vxor.u32 %v1015, 2147483648
    %v1032 = vxor.u32 %v1016, 2147483648
    %v1033 = vmul.f32 %v1021, 1.442695
    %v1034 = vpow.pop %v1033
    %v1035 = vmul.f32 %v1022, 1.442695
    %v1036 = vpow.pop %v1035
    %v1037 = vmul.f32 %v1023, 1.442695
    %v1038 = vpow.pop %v1037
    %v1039 = vmul.f32 %v1024, 1.442695
    %v1040 = vpow.pop %v1039
    %v1041 = vmul.f32 %v1025, 1.442695
    %v1042 = vpow.pop %v1041
    %v1043 = vmul.f32 %v1026, 1.442695
    %v1044 = vpow.pop %v1043
    %v1045 = vmul.f32 %v1027, 1.442695
    %v1046 = vpow.pop %v1045
    %v1047 = vmul.f32 %v1028, 1.442695
    %v1048 = vpow.pop %v1047
    %v1049 = vmul.f32 %v1029, 1.442695
    %v1050 = vpow.pop %v1049
    %v1051 = vmul.f32 %v1030, 1.442695
    %v1052 = vpow.pop %v1051
    %v1053 = vmul.f32 %v1031, 1.442695
    %v1054 = vpow.pop %v1053
    %v1055 = vmul.f32 %v1032, 1.442695
    %v1056 = vpow.pop %v1055
    %v1057 = vadd.f32 %v1034, 1.0
    %v1058 = vadd.f32 %v1036, 1.0
    %v1059 = vadd.f32 %v1038, 1.0
    %v1060 = vadd.f32 %v1040, 1.0
    %v1061 = vadd.f32 %v1042, 1.0
    %v1062 = vadd.f32 %v1044, 1.0
    %v1063 = vadd.f32 %v1046, 1.0
    %v1064 = vadd.f32 %v1048, 1.0
    %v1065 = vadd.f32 %v1050, 1.0
    %v1066 = vadd.f32 %v1052, 1.0
    %v1067 = vadd.f32 %v1054, 1.0
    %v1068 = vadd.f32 %v1056, 1.0
    %v1069 = vrcp.pop %v1057
    %v1070 = vmul.f32 1.0, %v1069
    %v1071 = vrcp.pop %v1058
    %v1072 = vmul.f32 1.0, %v1071
    %v1073 = vrcp.pop %v1059
    %v1074 = vmul.f32 1.0, %v1073
    %v1075 = vrcp.pop %v1060
    %v1076 = vmul.f32 1.0, %v1075
    %v1077 = vrcp.pop %v1061
    %v1078 = vmul.f32 1.0, %v1077
    %v1079 = vrcp.pop %v1062
    %v1080 = vmul.f32 1.0, %v1079
    %v1081 = vrcp.pop %v1063
    %v1082 = vmul.f32 1.0, %v1081
    %v1083 = vrcp.pop %v1064
    %v1084 = vmul.f32 1.0, %v1083
    %v1085 = vrcp.pop %v1065
    %v1086 = vmul.f32 1.0, %v1085
    %v1087 = vrcp.pop %v1066
    %v1088 = vmul.f32 1.0, %v1087
    %v1089 = vrcp.pop %v1067
    %v1090 = vmul.f32 1.0, %v1089
    %v1091 = vrcp.pop %v1068
    %v1092 = vmul.f32 1.0, %v1091
    %v1093 = vtanh.pop %v1017
    %v1094 = vtanh.pop %v1018
    %v1095 = vtanh.pop %v1019
    %v1096 = vtanh.pop %v1020
    %v1097 = vmul.f32 %v1078, %v828
    %v1098 = vmul.f32 %v1080, %v829
    %v1099 = vmul.f32 %v1082, %v830
    %v1100 = vmul.f32 %v1084, %v831
    %v1101 = vmul.f32 %v1070, %v1093
    %v1102 = vmul.f32 %v1072, %v1094
    %v1103 = vmul.f32 %v1074, %v1095
    %v1104 = vmul.f32 %v1076, %v1096
    %v1105 = vadd.f32 %v1097, %v1101
    %v1106 = vadd.f32 %v1098, %v1102
    %v1107 = vadd.f32 %v1099, %v1103
    %v1108 = vadd.f32 %v1100, %v1104
    %v1109 = vtanh.pop %v1105
    %v1110 = vtanh.pop %v1106
    %v1111 = vtanh.pop %v1107
    %v1112 = vtanh.pop %v1108
    %v1113 = vmul.f32 %v1086, %v1109
    %v1114 = vmul.f32 %v1088, %v1110
    %v1115 = vmul.f32 %v1090, %v1111
    %v1116 = vmul.f32 %v1092, %v1112
    %v1117 = vlaneseq
    %v1118 = vshrl.u32 %v1117, 7
    %v1119 = vsub.s32 3, %v1118
    %v1120 = vrot.slane %v27, %v1119
    %v1121 = vmul.f32 %v80, %v1120
    %v1122 = vmul.f32 %v85, %v1120
    %v1123 = vmul.f32 %v90, %v1120
    %v1124 = vmul.f32 %v95, %v1120
    %v1125 = vmul.f32 %v100, %v1120
    %v1126 = vmul.f32 %v105, %v1120
    %v1127 = vmul.f32 %v110, %v1120
    %v1128 = vmul.f32 %v115, %v1120
    %v1129 = vmul.f32 %v120, %v1120
    %v1130 = vmul.f32 %v125, %v1120
    %v1131 = vmul.f32 %v130, %v1120
    %v1132 = vmul.f32 %v135, %v1120
    %v1133 = vmul.f32 %v140, %v1120
    %v1134 = vmul.f32 %v145, %v1120
    %v1135 = vmul.f32 %v150, %v1120
    %v1136 = vmul.f32 %v155, %v1120
    %1137 = vmatprep.subr.mxu0 0.0
    %1138 = vmatpush1.msra.mxu0 %v1113
    %1139 = vmatprep.subr.mxu0 0.0
    %1140 = vmatpush1.msra.mxu0 %v1114
    %1141 = vmatprep.subr.mxu0 0.0
    %1142 = vmatpush1.msra.mxu0 %v1115
    %1143 = vmatprep.subr.mxu0 0.0
    %1144 = vmatpush1.msra.mxu0 %v1116
    %1145 = vmatprep.subr.mxu0 0.0
    %1146 = vmatpush1.msra.mxu0 0.0
    %1147 = vmatprep.subr.mxu0 0.0
    %1148 = vmatpush1.msra.mxu0 0.0
    %1149 = vmatprep.subr.mxu0 0.0
    %1150 = vmatpush1.msra.mxu0 0.0
    %1151 = vmatprep.subr.mxu0 0.0
    %1152 = vmatpush1.msra.mxu0 0.0
    %1153 = vmatprep.subr.mxu0 0.0
    %1154 = vmatpush1.msra.mxu0 0.0
    %1155 = vmatprep.subr.mxu0 0.0
    %1156 = vmatpush1.msra.mxu0 0.0
    %1157 = vmatprep.subr.mxu0 0.0
    %1158 = vmatpush1.msra.mxu0 0.0
    %1159 = vmatprep.subr.mxu0 0.0
    %1160 = vmatpush1.msra.mxu0 0.0
    %1161 = vmatprep.subr.mxu0 0.0
    %1162 = vmatpush1.msra.mxu0 0.0
    %1163 = vmatprep.subr.mxu0 0.0
    %1164 = vmatpush1.msra.mxu0 0.0
    %1165 = vmatprep.subr.mxu0 0.0
    %1166 = vmatpush1.msra.mxu0 0.0
    %1167 = vmatprep.subr.mxu0 0.0
    %1168 = vmatpush1.msra.mxu0 0.0
    %1169 = vmatprep.subr.mxu0 0.0
    %1170 = vmatpush1.msra.mxu0 0.0
    %1171 = vmatprep.subr.mxu0 0.0
    %1172 = vmatpush1.msra.mxu0 0.0
    %1173 = vmatprep.subr.mxu0 0.0
    %1174 = vmatpush1.msra.mxu0 0.0
    %1175 = vmatprep.subr.mxu0 0.0
    %1176 = vmatpush1.msra.mxu0 0.0
    %1177 = vmatprep.subr.mxu0 0.0
    %1178 = vmatpush1.msra.mxu0 0.0
    %1179 = vmatprep.subr.mxu0 0.0
    %1180 = vmatpush1.msra.mxu0 0.0
    %1181 = vmatprep.subr.mxu0 0.0
    %1182 = vmatpush1.msra.mxu0 0.0
    %1183 = vmatprep.subr.mxu0 0.0
    %1184 = vmatpush1.msra.mxu0 0.0
    %1185 = vmatprep.subr.mxu0 0.0
    %1186 = vmatpush1.msra.mxu0 0.0
    %1187 = vmatprep.subr.mxu0 0.0
    %1188 = vmatpush1.msra.mxu0 0.0
    %1189 = vmatprep.subr.mxu0 0.0
    %1190 = vmatpush1.msra.mxu0 0.0
    %1191 = vmatprep.subr.mxu0 0.0
    %1192 = vmatpush1.msra.mxu0 0.0
    %1193 = vmatprep.subr.mxu0 0.0
    %1194 = vmatpush1.msra.mxu0 0.0
    %1195 = vmatprep.subr.mxu0 0.0
    %1196 = vmatpush1.msra.mxu0 0.0
    %1197 = vmatprep.subr.mxu0 0.0
    %1198 = vmatpush1.msra.mxu0 0.0
    %1199 = vmatprep.subr.mxu0 0.0
    %1200 = vmatpush1.msra.mxu0 0.0
    %1201 = vmatprep.mubr.f32.mxu0 0.0
    %1202 = vmatmul.mubr.f32.gmra.mrb[0].mxu0 %v179
    %v1203 = vpop.f32.mrb[0].mxu0
    %v1204 = vadd.f32 %v1121, %v1203
    %v1205 = vpop.f32.mrb[0].mxu0
    %1206 = vmatprep.mubr.f32.mxu0 0.0
    %1207 = vmatmul.mubr.f32.gmra.mrb[0].mxu0 %v182
    %v1208 = vpop.f32.mrb[0].mxu0
    %v1209 = vadd.f32 %v1122, %v1208
    %v1210 = vpop.f32.mrb[0].mxu0
    %1211 = vmatprep.mubr.f32.mxu0 0.0
    %1212 = vmatmul.mubr.f32.gmra.mrb[0].mxu0 %v185
    %v1213 = vpop.f32.mrb[0].mxu0
    %v1214 = vadd.f32 %v1123, %v1213
    %v1215 = vpop.f32.mrb[0].mxu0
    %1216 = vmatprep.mubr.f32.mxu0 0.0
    %1217 = vmatmul.mubr.f32.gmra.mrb[0].mxu0 %v188
    %v1218 = vpop.f32.mrb[0].mxu0
    %v1219 = vadd.f32 %v1124, %v1218
    %v1220 = vpop.f32.mrb[0].mxu0
    %1221 = vmatprep.mubr.f32.mxu0 0.0
    %1222 = vmatmul.mubr.f32.gmra.mrb[0].mxu0 %v191
    %v1223 = vpop.f32.mrb[0].mxu0
    %v1224 = vadd.f32 %v1125, %v1223
    %v1225 = vpop.f32.mrb[0].mxu0
    %1226 = vmatprep.mubr.f32.mxu0 0.0
    %1227 = vmatmul.mubr.f32.gmra.mrb[0].mxu0 %v194
    %v1228 = vpop.f32.mrb[0].mxu0
    %v1229 = vadd.f32 %v1126, %v1228
    %v1230 = vpop.f32.mrb[0].mxu0
    %1231 = vmatprep.mubr.f32.mxu0 0.0
    %1232 = vmatmul.mubr.f32.gmra.mrb[0].mxu0 %v197
    %v1233 = vpop.f32.mrb[0].mxu0
    %v1234 = vadd.f32 %v1127, %v1233
    %v1235 = vpop.f32.mrb[0].mxu0
    %1236 = vmatprep.mubr.f32.mxu0 0.0
    %1237 = vmatmul.mubr.f32.gmra.mrb[0].mxu0 %v200
    %v1238 = vpop.f32.mrb[0].mxu0
    %v1239 = vadd.f32 %v1128, %v1238
    %v1240 = vpop.f32.mrb[0].mxu0
    %1241 = vmatprep.mubr.f32.mxu0 0.0
    %1242 = vmatmul.mubr.f32.gmra.mrb[0].mxu0 %v203
    %v1243 = vpop.f32.mrb[0].mxu0
    %v1244 = vadd.f32 %v1129, %v1243
    %v1245 = vpop.f32.mrb[0].mxu0
    %1246 = vmatprep.mubr.f32.mxu0 0.0
    %1247 = vmatmul.mubr.f32.gmra.mrb[0].mxu0 %v206
    %v1248 = vpop.f32.mrb[0].mxu0
    %v1249 = vadd.f32 %v1130, %v1248
    %v1250 = vpop.f32.mrb[0].mxu0
    %1251 = vmatprep.mubr.f32.mxu0 0.0
    %1252 = vmatmul.mubr.f32.gmra.mrb[0].mxu0 %v209
    %v1253 = vpop.f32.mrb[0].mxu0
    %v1254 = vadd.f32 %v1131, %v1253
    %v1255 = vpop.f32.mrb[0].mxu0
    %1256 = vmatprep.mubr.f32.mxu0 0.0
    %1257 = vmatmul.mubr.f32.gmra.mrb[0].mxu0 %v212
    %v1258 = vpop.f32.mrb[0].mxu0
    %v1259 = vadd.f32 %v1132, %v1258
    %v1260 = vpop.f32.mrb[0].mxu0
    %1261 = vmatprep.mubr.f32.mxu0 0.0
    %1262 = vmatmul.mubr.f32.gmra.mrb[0].mxu0 %v215
    %v1263 = vpop.f32.mrb[0].mxu0
    %v1264 = vadd.f32 %v1133, %v1263
    %v1265 = vpop.f32.mrb[0].mxu0
    %1266 = vmatprep.mubr.f32.mxu0 0.0
    %1267 = vmatmul.mubr.f32.gmra.mrb[0].mxu0 %v218
    %v1268 = vpop.f32.mrb[0].mxu0
    %v1269 = vadd.f32 %v1134, %v1268
    %v1270 = vpop.f32.mrb[0].mxu0
    %1271 = vmatprep.mubr.f32.mxu0 0.0
    %1272 = vmatmul.mubr.f32.gmra.mrb[0].mxu0 %v221
    %v1273 = vpop.f32.mrb[0].mxu0
    %v1274 = vadd.f32 %v1135, %v1273
    %v1275 = vpop.f32.mrb[0].mxu0
    %1276 = vmatprep.mubr.f32.mxu0 0.0
    %1277 = vmatmul.mubr.f32.gmra.mrb[0].mxu0 %v224
    %v1278 = vpop.f32.mrb[0].mxu0
    %v1279 = vadd.f32 %v1136, %v1278
    %v1280 = vpop.f32.mrb[0].mxu0
    %1281 = vdwg.mxu0
    %v1282 = vadd.f32 %v1204, %v374
    %v1283 = vadd.f32 %v1209, %v379
    %v1284 = vadd.f32 %v1214, %v384
    %v1285 = vadd.f32 %v1219, %v389
    %v1286 = vadd.f32 %v1224, %v394
    %v1287 = vadd.f32 %v1229, %v399
    %v1288 = vadd.f32 %v1234, %v404
    %v1289 = vadd.f32 %v1239, %v409
    %v1290 = vadd.f32 %v1244, %v414
    %v1291 = vadd.f32 %v1249, %v419
    %v1292 = vadd.f32 %v1254, %v424
    %v1293 = vadd.f32 %v1259, %v429
    %v1294 = vadd.f32 %v1264, %v434
    %v1295 = vadd.f32 %v1269, %v439
    %v1296 = vadd.f32 %v1274, %v444
    %v1297 = vadd.f32 %v1279, %v449
    %v1298 = vxor.u32 %v1282, 2147483648
    %v1299 = vxor.u32 %v1283, 2147483648
    %v1300 = vxor.u32 %v1284, 2147483648
    %v1301 = vxor.u32 %v1285, 2147483648
    %v1302 = vxor.u32 %v1286, 2147483648
    %v1303 = vxor.u32 %v1287, 2147483648
    %v1304 = vxor.u32 %v1288, 2147483648
    %v1305 = vxor.u32 %v1289, 2147483648
    %v1306 = vxor.u32 %v1290, 2147483648
    %v1307 = vxor.u32 %v1291, 2147483648
    %v1308 = vxor.u32 %v1292, 2147483648
    %v1309 = vxor.u32 %v1293, 2147483648
    %v1310 = vmul.f32 %v1298, 1.442695
    %v1311 = vpow.pop %v1310
    %v1312 = vmul.f32 %v1299, 1.442695
    %v1313 = vpow.pop %v1312
    %v1314 = vmul.f32 %v1300, 1.442695
    %v1315 = vpow.pop %v1314
    %v1316 = vmul.f32 %v1301, 1.442695
    %v1317 = vpow.pop %v1316
    %v1318 = vmul.f32 %v1302, 1.442695
    %v1319 = vpow.pop %v1318
    %v1320 = vmul.f32 %v1303, 1.442695
    %v1321 = vpow.pop %v1320
    %v1322 = vmul.f32 %v1304, 1.442695
    %v1323 = vpow.pop %v1322
    %v1324 = vmul.f32 %v1305, 1.442695
    %v1325 = vpow.pop %v1324
    %v1326 = vmul.f32 %v1306, 1.442695
    %v1327 = vpow.pop %v1326
    %v1328 = vmul.f32 %v1307, 1.442695
    %v1329 = vpow.pop %v1328
    %v1330 = vmul.f32 %v1308, 1.442695
    %v1331 = vpow.pop %v1330
    %v1332 = vmul.f32 %v1309, 1.442695
    %v1333 = vpow.pop %v1332
    %v1334 = vadd.f32 %v1311, 1.0
    %v1335 = vadd.f32 %v1313, 1.0
    %v1336 = vadd.f32 %v1315, 1.0
    %v1337 = vadd.f32 %v1317, 1.0
    %v1338 = vadd.f32 %v1319, 1.0
    %v1339 = vadd.f32 %v1321, 1.0
    %v1340 = vadd.f32 %v1323, 1.0
    %v1341 = vadd.f32 %v1325, 1.0
    %v1342 = vadd.f32 %v1327, 1.0
    %v1343 = vadd.f32 %v1329, 1.0
    %v1344 = vadd.f32 %v1331, 1.0
    %v1345 = vadd.f32 %v1333, 1.0
    %v1346 = vrcp.pop %v1334
    %v1347 = vmul.f32 1.0, %v1346
    %v1348 = vrcp.pop %v1335
    %v1349 = vmul.f32 1.0, %v1348
    %v1350 = vrcp.pop %v1336
    %v1351 = vmul.f32 1.0, %v1350
    %v1352 = vrcp.pop %v1337
    %v1353 = vmul.f32 1.0, %v1352
    %v1354 = vrcp.pop %v1338
    %v1355 = vmul.f32 1.0, %v1354
    %v1356 = vrcp.pop %v1339
    %v1357 = vmul.f32 1.0, %v1356
    %v1358 = vrcp.pop %v1340
    %v1359 = vmul.f32 1.0, %v1358
    %v1360 = vrcp.pop %v1341
    %v1361 = vmul.f32 1.0, %v1360
    %v1362 = vrcp.pop %v1342
    %v1363 = vmul.f32 1.0, %v1362
    %v1364 = vrcp.pop %v1343
    %v1365 = vmul.f32 1.0, %v1364
    %v1366 = vrcp.pop %v1344
    %v1367 = vmul.f32 1.0, %v1366
    %v1368 = vrcp.pop %v1345
    %v1369 = vmul.f32 1.0, %v1368
    %v1370 = vtanh.pop %v1294
    %v1371 = vtanh.pop %v1295
    %v1372 = vtanh.pop %v1296
    %v1373 = vtanh.pop %v1297
    %v1374 = vmul.f32 %v1355, %v1105
    %v1375 = vmul.f32 %v1357, %v1106
    %v1376 = vmul.f32 %v1359, %v1107
    %v1377 = vmul.f32 %v1361, %v1108
    %v1378 = vmul.f32 %v1347, %v1370
    %v1379 = vmul.f32 %v1349, %v1371
    %v1380 = vmul.f32 %v1351, %v1372
    %v1381 = vmul.f32 %v1353, %v1373
    %v1382 = vadd.f32 %v1374, %v1378
    %v1383 = vadd.f32 %v1375, %v1379
    %v1384 = vadd.f32 %v1376, %v1380
    %v1385 = vadd.f32 %v1377, %v1381
    %v1386 = vtanh.pop %v1382
    %v1387 = vtanh.pop %v1383
    %v1388 = vtanh.pop %v1384
    %v1389 = vtanh.pop %v1385
    %v1390 = vmul.f32 %v1363, %v1386
    %v1391 = vmul.f32 %v1365, %v1387
    %v1392 = vmul.f32 %v1367, %v1388
    %v1393 = vmul.f32 %v1369, %v1389
    %v1394 = vlaneseq
    %v1395 = vshrl.u32 %v1394, 7
    %v1396 = vsub.s32 4, %v1395
    %v1397 = vrot.slane %v27, %v1396
    %v1398 = vmul.f32 %v80, %v1397
    %v1399 = vmul.f32 %v85, %v1397
    %v1400 = vmul.f32 %v90, %v1397
    %v1401 = vmul.f32 %v95, %v1397
    %v1402 = vmul.f32 %v100, %v1397
    %v1403 = vmul.f32 %v105, %v1397
    %v1404 = vmul.f32 %v110, %v1397
    %v1405 = vmul.f32 %v115, %v1397
    %v1406 = vmul.f32 %v120, %v1397
    %v1407 = vmul.f32 %v125, %v1397
    %v1408 = vmul.f32 %v130, %v1397
    %v1409 = vmul.f32 %v135, %v1397
    %v1410 = vmul.f32 %v140, %v1397
    %v1411 = vmul.f32 %v145, %v1397
    %v1412 = vmul.f32 %v150, %v1397
    %v1413 = vmul.f32 %v155, %v1397
    %1414 = vmatprep.subr.mxu0 0.0
    %1415 = vmatpush1.msra.mxu0 %v1390
    %1416 = vmatprep.subr.mxu0 0.0
    %1417 = vmatpush1.msra.mxu0 %v1391
    %1418 = vmatprep.subr.mxu0 0.0
    %1419 = vmatpush1.msra.mxu0 %v1392
    %1420 = vmatprep.subr.mxu0 0.0
    %1421 = vmatpush1.msra.mxu0 %v1393
    %1422 = vmatprep.subr.mxu0 0.0
    %1423 = vmatpush1.msra.mxu0 0.0
    %1424 = vmatprep.subr.mxu0 0.0
    %1425 = vmatpush1.msra.mxu0 0.0
    %1426 = vmatprep.subr.mxu0 0.0
    %1427 = vmatpush1.msra.mxu0 0.0
    %1428 = vmatprep.subr.mxu0 0.0
    %1429 = vmatpush1.msra.mxu0 0.0
    %1430 = vmatprep.subr.mxu0 0.0
    %1431 = vmatpush1.msra.mxu0 0.0
    %1432 = vmatprep.subr.mxu0 0.0
    %1433 = vmatpush1.msra.mxu0 0.0
    %1434 = vmatprep.subr.mxu0 0.0
    %1435 = vmatpush1.msra.mxu0 0.0
    %1436 = vmatprep.subr.mxu0 0.0
    %1437 = vmatpush1.msra.mxu0 0.0
    %1438 = vmatprep.subr.mxu0 0.0
    %1439 = vmatpush1.msra.mxu0 0.0
    %1440 = vmatprep.subr.mxu0 0.0
    %1441 = vmatpush1.msra.mxu0 0.0
    %1442 = vmatprep.subr.mxu0 0.0
    %1443 = vmatpush1.msra.mxu0 0.0
    %1444 = vmatprep.subr.mxu0 0.0
    %1445 = vmatpush1.msra.mxu0 0.0
    %1446 = vmatprep.subr.mxu0 0.0
    %1447 = vmatpush1.msra.mxu0 0.0
    %1448 = vmatprep.subr.mxu0 0.0
    %1449 = vmatpush1.msra.mxu0 0.0
    %1450 = vmatprep.subr.mxu0 0.0
    %1451 = vmatpush1.msra.mxu0 0.0
    %1452 = vmatprep.subr.mxu0 0.0
    %1453 = vmatpush1.msra.mxu0 0.0
    %1454 = vmatprep.subr.mxu0 0.0
    %1455 = vmatpush1.msra.mxu0 0.0
    %1456 = vmatprep.subr.mxu0 0.0
    %1457 = vmatpush1.msra.mxu0 0.0
    %1458 = vmatprep.subr.mxu0 0.0
    %1459 = vmatpush1.msra.mxu0 0.0
    %1460 = vmatprep.subr.mxu0 0.0
    %1461 = vmatpush1.msra.mxu0 0.0
    %1462 = vmatprep.subr.mxu0 0.0
    %1463 = vmatpush1.msra.mxu0 0.0
    %1464 = vmatprep.subr.mxu0 0.0
    %1465 = vmatpush1.msra.mxu0 0.0
    %1466 = vmatprep.subr.mxu0 0.0
    %1467 = vmatpush1.msra.mxu0 0.0
    %1468 = vmatprep.subr.mxu0 0.0
    %1469 = vmatpush1.msra.mxu0 0.0
    %1470 = vmatprep.subr.mxu0 0.0
    %1471 = vmatpush1.msra.mxu0 0.0
    %1472 = vmatprep.subr.mxu0 0.0
    %1473 = vmatpush1.msra.mxu0 0.0
    %1474 = vmatprep.subr.mxu0 0.0
    %1475 = vmatpush1.msra.mxu0 0.0
    %1476 = vmatprep.subr.mxu0 0.0
    %1477 = vmatpush1.msra.mxu0 0.0
    %1478 = vmatprep.mubr.f32.mxu0 0.0
    %1479 = vmatmul.mubr.f32.gmra.mrb[0].mxu0 %v179
    %v1480 = vpop.f32.mrb[0].mxu0
    %v1481 = vadd.f32 %v1398, %v1480
    %v1482 = vpop.f32.mrb[0].mxu0
    %1483 = vmatprep.mubr.f32.mxu0 0.0
    %1484 = vmatmul.mubr.f32.gmra.mrb[0].mxu0 %v182
    %v1485 = vpop.f32.mrb[0].mxu0
    %v1486 = vadd.f32 %v1399, %v1485
    %v1487 = vpop.f32.mrb[0].mxu0
    %1488 = vmatprep.mubr.f32.mxu0 0.0
    %1489 = vmatmul.mubr.f32.gmra.mrb[0].mxu0 %v185
    %v1490 = vpop.f32.mrb[0].mxu0
    %v1491 = vadd.f32 %v1400, %v1490
    %v1492 = vpop.f32.mrb[0].mxu0
    %1493 = vmatprep.mubr.f32.mxu0 0.0
    %1494 = vmatmul.mubr.f32.gmra.mrb[0].mxu0 %v188
    %v1495 = vpop.f32.mrb[0].mxu0
    %v1496 = vadd.f32 %v1401, %v1495
    %v1497 = vpop.f32.mrb[0].mxu0
    %1498 = vmatprep.mubr.f32.mxu0 0.0
    %1499 = vmatmul.mubr.f32.gmra.mrb[0].mxu0 %v191
    %v1500 = vpop.f32.mrb[0].mxu0
    %v1501 = vadd.f32 %v1402, %v1500
    %v1502 = vpop.f32.mrb[0].mxu0
    %1503 = vmatprep.mubr.f32.mxu0 0.0
    %1504 = vmatmul.mubr.f32.gmra.mrb[0].mxu0 %v194
    %v1505 = vpop.f32.mrb[0].mxu0
    %v1506 = vadd.f32 %v1403, %v1505
    %v1507 = vpop.f32.mrb[0].mxu0
    %1508 = vmatprep.mubr.f32.mxu0 0.0
    %1509 = vmatmul.mubr.f32.gmra.mrb[0].mxu0 %v197
    %v1510 = vpop.f32.mrb[0].mxu0
    %v1511 = vadd.f32 %v1404, %v1510
    %v1512 = vpop.f32.mrb[0].mxu0
    %1513 = vmatprep.mubr.f32.mxu0 0.0
    %1514 = vmatmul.mubr.f32.gmra.mrb[0].mxu0 %v200
    %v1515 = vpop.f32.mrb[0].mxu0
    %v1516 = vadd.f32 %v1405, %v1515
    %v1517 = vpop.f32.mrb[0].mxu0
    %1518 = vmatprep.mubr.f32.mxu0 0.0
    %1519 = vmatmul.mubr.f32.gmra.mrb[0].mxu0 %v203
    %v1520 = vpop.f32.mrb[0].mxu0
    %v1521 = vadd.f32 %v1406, %v1520
    %v1522 = vpop.f32.mrb[0].mxu0
    %1523 = vmatprep.mubr.f32.mxu0 0.0
    %1524 = vmatmul.mubr.f32.gmra.mrb[0].mxu0 %v206
    %v1525 = vpop.f32.mrb[0].mxu0
    %v1526 = vadd.f32 %v1407, %v1525
    %v1527 = vpop.f32.mrb[0].mxu0
    %1528 = vmatprep.mubr.f32.mxu0 0.0
    %1529 = vmatmul.mubr.f32.gmra.mrb[0].mxu0 %v209
    %v1530 = vpop.f32.mrb[0].mxu0
    %v1531 = vadd.f32 %v1408, %v1530
    %v1532 = vpop.f32.mrb[0].mxu0
    %1533 = vmatprep.mubr.f32.mxu0 0.0
    %1534 = vmatmul.mubr.f32.gmra.mrb[0].mxu0 %v212
    %v1535 = vpop.f32.mrb[0].mxu0
    %v1536 = vadd.f32 %v1409, %v1535
    %v1537 = vpop.f32.mrb[0].mxu0
    %1538 = vmatprep.mubr.f32.mxu0 0.0
    %1539 = vmatmul.mubr.f32.gmra.mrb[0].mxu0 %v215
    %v1540 = vpop.f32.mrb[0].mxu0
    %v1541 = vadd.f32 %v1410, %v1540
    %v1542 = vpop.f32.mrb[0].mxu0
    %1543 = vmatprep.mubr.f32.mxu0 0.0
    %1544 = vmatmul.mubr.f32.gmra.mrb[0].mxu0 %v218
    %v1545 = vpop.f32.mrb[0].mxu0
    %v1546 = vadd.f32 %v1411, %v1545
    %v1547 = vpop.f32.mrb[0].mxu0
    %1548 = vmatprep.mubr.f32.mxu0 0.0
    %1549 = vmatmul.mubr.f32.gmra.mrb[0].mxu0 %v221
    %v1550 = vpop.f32.mrb[0].mxu0
    %v1551 = vadd.f32 %v1412, %v1550
    %v1552 = vpop.f32.mrb[0].mxu0
    %1553 = vmatprep.mubr.f32.mxu0 0.0
    %1554 = vmatmul.mubr.f32.gmra.mrb[0].mxu0 %v224
    %v1555 = vpop.f32.mrb[0].mxu0
    %v1556 = vadd.f32 %v1413, %v1555
    %v1557 = vpop.f32.mrb[0].mxu0
    %1558 = vdwg.mxu0
    %v1559 = vadd.f32 %v1481, %v374
    %v1560 = vadd.f32 %v1486, %v379
    %v1561 = vadd.f32 %v1491, %v384
    %v1562 = vadd.f32 %v1496, %v389
    %v1563 = vadd.f32 %v1501, %v394
    %v1564 = vadd.f32 %v1506, %v399
    %v1565 = vadd.f32 %v1511, %v404
    %v1566 = vadd.f32 %v1516, %v409
    %v1567 = vadd.f32 %v1521, %v414
    %v1568 = vadd.f32 %v1526, %v419
    %v1569 = vadd.f32 %v1531, %v424
    %v1570 = vadd.f32 %v1536, %v429
    %v1571 = vadd.f32 %v1541, %v434
    %v1572 = vadd.f32 %v1546, %v439
    %v1573 = vadd.f32 %v1551, %v444
    %v1574 = vadd.f32 %v1556, %v449
    %v1575 = vxor.u32 %v1559, 2147483648
    %v1576 = vxor.u32 %v1560, 2147483648
    %v1577 = vxor.u32 %v1561, 2147483648
    %v1578 = vxor.u32 %v1562, 2147483648
    %v1579 = vxor.u32 %v1563, 2147483648
    %v1580 = vxor.u32 %v1564, 2147483648
    %v1581 = vxor.u32 %v1565, 2147483648
    %v1582 = vxor.u32 %v1566, 2147483648
    %v1583 = vxor.u32 %v1567, 2147483648
    %v1584 = vxor.u32 %v1568, 2147483648
    %v1585 = vxor.u32 %v1569, 2147483648
    %v1586 = vxor.u32 %v1570, 2147483648
    %v1587 = vmul.f32 %v1575, 1.442695
    %v1588 = vpow.pop %v1587
    %v1589 = vmul.f32 %v1576, 1.442695
    %v1590 = vpow.pop %v1589
    %v1591 = vmul.f32 %v1577, 1.442695
    %v1592 = vpow.pop %v1591
    %v1593 = vmul.f32 %v1578, 1.442695
    %v1594 = vpow.pop %v1593
    %v1595 = vmul.f32 %v1579, 1.442695
    %v1596 = vpow.pop %v1595
    %v1597 = vmul.f32 %v1580, 1.442695
    %v1598 = vpow.pop %v1597
    %v1599 = vmul.f32 %v1581, 1.442695
    %v1600 = vpow.pop %v1599
    %v1601 = vmul.f32 %v1582, 1.442695
    %v1602 = vpow.pop %v1601
    %v1603 = vmul.f32 %v1583, 1.442695
    %v1604 = vpow.pop %v1603
    %v1605 = vmul.f32 %v1584, 1.442695
    %v1606 = vpow.pop %v1605
    %v1607 = vmul.f32 %v1585, 1.442695
    %v1608 = vpow.pop %v1607
    %v1609 = vmul.f32 %v1586, 1.442695
    %v1610 = vpow.pop %v1609
    %v1611 = vadd.f32 %v1588, 1.0
    %v1612 = vadd.f32 %v1590, 1.0
    %v1613 = vadd.f32 %v1592, 1.0
    %v1614 = vadd.f32 %v1594, 1.0
    %v1615 = vadd.f32 %v1596, 1.0
    %v1616 = vadd.f32 %v1598, 1.0
    %v1617 = vadd.f32 %v1600, 1.0
    %v1618 = vadd.f32 %v1602, 1.0
    %v1619 = vadd.f32 %v1604, 1.0
    %v1620 = vadd.f32 %v1606, 1.0
    %v1621 = vadd.f32 %v1608, 1.0
    %v1622 = vadd.f32 %v1610, 1.0
    %v1623 = vrcp.pop %v1611
    %v1624 = vmul.f32 1.0, %v1623
    %v1625 = vrcp.pop %v1612
    %v1626 = vmul.f32 1.0, %v1625
    %v1627 = vrcp.pop %v1613
    %v1628 = vmul.f32 1.0, %v1627
    %v1629 = vrcp.pop %v1614
    %v1630 = vmul.f32 1.0, %v1629
    %v1631 = vrcp.pop %v1615
    %v1632 = vmul.f32 1.0, %v1631
    %v1633 = vrcp.pop %v1616
    %v1634 = vmul.f32 1.0, %v1633
    %v1635 = vrcp.pop %v1617
    %v1636 = vmul.f32 1.0, %v1635
    %v1637 = vrcp.pop %v1618
    %v1638 = vmul.f32 1.0, %v1637
    %v1639 = vrcp.pop %v1619
    %v1640 = vmul.f32 1.0, %v1639
    %v1641 = vrcp.pop %v1620
    %v1642 = vmul.f32 1.0, %v1641
    %v1643 = vrcp.pop %v1621
    %v1644 = vmul.f32 1.0, %v1643
    %v1645 = vrcp.pop %v1622
    %v1646 = vmul.f32 1.0, %v1645
    %v1647 = vtanh.pop %v1571
    %v1648 = vtanh.pop %v1572
    %v1649 = vtanh.pop %v1573
    %v1650 = vtanh.pop %v1574
    %v1651 = vmul.f32 %v1632, %v1382
    %v1652 = vmul.f32 %v1634, %v1383
    %v1653 = vmul.f32 %v1636, %v1384
    %v1654 = vmul.f32 %v1638, %v1385
    %v1655 = vmul.f32 %v1624, %v1647
    %v1656 = vmul.f32 %v1626, %v1648
    %v1657 = vmul.f32 %v1628, %v1649
    %v1658 = vmul.f32 %v1630, %v1650
    %v1659 = vadd.f32 %v1651, %v1655
    %v1660 = vadd.f32 %v1652, %v1656
    %v1661 = vadd.f32 %v1653, %v1657
    %v1662 = vadd.f32 %v1654, %v1658
    %v1663 = vtanh.pop %v1659
    %v1664 = vtanh.pop %v1660
    %v1665 = vtanh.pop %v1661
    %v1666 = vtanh.pop %v1662
    %v1667 = vmul.f32 %v1640, %v1663
    %v1668 = vmul.f32 %v1642, %v1664
    %v1669 = vmul.f32 %v1644, %v1665
    %v1670 = vmul.f32 %v1646, %v1666
    %v1671 = vlaneseq
    %v1672 = vshrl.u32 %v1671, 7
    %v1673 = vsub.s32 5, %v1672
    %v1674 = vrot.slane %v27, %v1673
    %v1675 = vmul.f32 %v80, %v1674
    %v1676 = vmul.f32 %v85, %v1674
    %v1677 = vmul.f32 %v90, %v1674
    %v1678 = vmul.f32 %v95, %v1674
    %v1679 = vmul.f32 %v100, %v1674
    %v1680 = vmul.f32 %v105, %v1674
    %v1681 = vmul.f32 %v110, %v1674
    %v1682 = vmul.f32 %v115, %v1674
    %v1683 = vmul.f32 %v120, %v1674
    %v1684 = vmul.f32 %v125, %v1674
    %v1685 = vmul.f32 %v130, %v1674
    %v1686 = vmul.f32 %v135, %v1674
    %v1687 = vmul.f32 %v140, %v1674
    %v1688 = vmul.f32 %v145, %v1674
    %v1689 = vmul.f32 %v150, %v1674
    %v1690 = vmul.f32 %v155, %v1674
    %1691 = vmatprep.subr.mxu0 0.0
    %1692 = vmatpush1.msra.mxu0 %v1667
    %1693 = vmatprep.subr.mxu0 0.0
    %1694 = vmatpush1.msra.mxu0 %v1668
    %1695 = vmatprep.subr.mxu0 0.0
    %1696 = vmatpush1.msra.mxu0 %v1669
    %1697 = vmatprep.subr.mxu0 0.0
    %1698 = vmatpush1.msra.mxu0 %v1670
    %1699 = vmatprep.subr.mxu0 0.0
    %1700 = vmatpush1.msra.mxu0 0.0
    %1701 = vmatprep.subr.mxu0 0.0
    %1702 = vmatpush1.msra.mxu0 0.0
    %1703 = vmatprep.subr.mxu0 0.0
    %1704 = vmatpush1.msra.mxu0 0.0
    %1705 = vmatprep.subr.mxu0 0.0
    %1706 = vmatpush1.msra.mxu0 0.0
    %1707 = vmatprep.subr.mxu0 0.0
    %1708 = vmatpush1.msra.mxu0 0.0
    %1709 = vmatprep.subr.mxu0 0.0
    %1710 = vmatpush1.msra.mxu0 0.0
    %1711 = vmatprep.subr.mxu0 0.0
    %1712 = vmatpush1.msra.mxu0 0.0
    %1713 = vmatprep.subr.mxu0 0.0
    %1714 = vmatpush1.msra.mxu0 0.0
    %1715 = vmatprep.subr.mxu0 0.0
    %1716 = vmatpush1.msra.mxu0 0.0
    %1717 = vmatprep.subr.mxu0 0.0
    %1718 = vmatpush1.msra.mxu0 0.0
    %1719 = vmatprep.subr.mxu0 0.0
    %1720 = vmatpush1.msra.mxu0 0.0
    %1721 = vmatprep.subr.mxu0 0.0
    %1722 = vmatpush1.msra.mxu0 0.0
    %1723 = vmatprep.subr.mxu0 0.0
    %1724 = vmatpush1.msra.mxu0 0.0
    %1725 = vmatprep.subr.mxu0 0.0
    %1726 = vmatpush1.msra.mxu0 0.0
    %1727 = vmatprep.subr.mxu0 0.0
    %1728 = vmatpush1.msra.mxu0 0.0
    %1729 = vmatprep.subr.mxu0 0.0
    %1730 = vmatpush1.msra.mxu0 0.0
    %1731 = vmatprep.subr.mxu0 0.0
    %1732 = vmatpush1.msra.mxu0 0.0
    %1733 = vmatprep.subr.mxu0 0.0
    %1734 = vmatpush1.msra.mxu0 0.0
    %1735 = vmatprep.subr.mxu0 0.0
    %1736 = vmatpush1.msra.mxu0 0.0
    %1737 = vmatprep.subr.mxu0 0.0
    %1738 = vmatpush1.msra.mxu0 0.0
    %1739 = vmatprep.subr.mxu0 0.0
    %1740 = vmatpush1.msra.mxu0 0.0
    %1741 = vmatprep.subr.mxu0 0.0
    %1742 = vmatpush1.msra.mxu0 0.0
    %1743 = vmatprep.subr.mxu0 0.0
    %1744 = vmatpush1.msra.mxu0 0.0
    %1745 = vmatprep.subr.mxu0 0.0
    %1746 = vmatpush1.msra.mxu0 0.0
    %1747 = vmatprep.subr.mxu0 0.0
    %1748 = vmatpush1.msra.mxu0 0.0
    %1749 = vmatprep.subr.mxu0 0.0
    %1750 = vmatpush1.msra.mxu0 0.0
    %1751 = vmatprep.subr.mxu0 0.0
    %1752 = vmatpush1.msra.mxu0 0.0
    %1753 = vmatprep.subr.mxu0 0.0
    %1754 = vmatpush1.msra.mxu0 0.0
    %1755 = vmatprep.mubr.f32.mxu0 0.0
    %1756 = vmatmul.mubr.f32.gmra.mrb[0].mxu0 %v179
    %v1757 = vpop.f32.mrb[0].mxu0
    %v1758 = vadd.f32 %v1675, %v1757
    %v1759 = vpop.f32.mrb[0].mxu0
    %1760 = vmatprep.mubr.f32.mxu0 0.0
    %1761 = vmatmul.mubr.f32.gmra.mrb[0].mxu0 %v182
    %v1762 = vpop.f32.mrb[0].mxu0
    %v1763 = vadd.f32 %v1676, %v1762
    %v1764 = vpop.f32.mrb[0].mxu0
    %1765 = vmatprep.mubr.f32.mxu0 0.0
    %1766 = vmatmul.mubr.f32.gmra.mrb[0].mxu0 %v185
    %v1767 = vpop.f32.mrb[0].mxu0
    %v1768 = vadd.f32 %v1677, %v1767
    %v1769 = vpop.f32.mrb[0].mxu0
    %1770 = vmatprep.mubr.f32.mxu0 0.0
    %1771 = vmatmul.mubr.f32.gmra.mrb[0].mxu0 %v188
    %v1772 = vpop.f32.mrb[0].mxu0
    %v1773 = vadd.f32 %v1678, %v1772
    %v1774 = vpop.f32.mrb[0].mxu0
    %1775 = vmatprep.mubr.f32.mxu0 0.0
    %1776 = vmatmul.mubr.f32.gmra.mrb[0].mxu0 %v191
    %v1777 = vpop.f32.mrb[0].mxu0
    %v1778 = vadd.f32 %v1679, %v1777
    %v1779 = vpop.f32.mrb[0].mxu0
    %1780 = vmatprep.mubr.f32.mxu0 0.0
    %1781 = vmatmul.mubr.f32.gmra.mrb[0].mxu0 %v194
    %v1782 = vpop.f32.mrb[0].mxu0
    %v1783 = vadd.f32 %v1680, %v1782
    %v1784 = vpop.f32.mrb[0].mxu0
    %1785 = vmatprep.mubr.f32.mxu0 0.0
    %1786 = vmatmul.mubr.f32.gmra.mrb[0].mxu0 %v197
    %v1787 = vpop.f32.mrb[0].mxu0
    %v1788 = vadd.f32 %v1681, %v1787
    %v1789 = vpop.f32.mrb[0].mxu0
    %1790 = vmatprep.mubr.f32.mxu0 0.0
    %1791 = vmatmul.mubr.f32.gmra.mrb[0].mxu0 %v200
    %v1792 = vpop.f32.mrb[0].mxu0
    %v1793 = vadd.f32 %v1682, %v1792
    %v1794 = vpop.f32.mrb[0].mxu0
    %1795 = vmatprep.mubr.f32.mxu0 0.0
    %1796 = vmatmul.mubr.f32.gmra.mrb[0].mxu0 %v203
    %v1797 = vpop.f32.mrb[0].mxu0
    %v1798 = vadd.f32 %v1683, %v1797
    %v1799 = vpop.f32.mrb[0].mxu0
    %1800 = vmatprep.mubr.f32.mxu0 0.0
    %1801 = vmatmul.mubr.f32.gmra.mrb[0].mxu0 %v206
    %v1802 = vpop.f32.mrb[0].mxu0
    %v1803 = vadd.f32 %v1684, %v1802
    %v1804 = vpop.f32.mrb[0].mxu0
    %1805 = vmatprep.mubr.f32.mxu0 0.0
    %1806 = vmatmul.mubr.f32.gmra.mrb[0].mxu0 %v209
    %v1807 = vpop.f32.mrb[0].mxu0
    %v1808 = vadd.f32 %v1685, %v1807
    %v1809 = vpop.f32.mrb[0].mxu0
    %1810 = vmatprep.mubr.f32.mxu0 0.0
    %1811 = vmatmul.mubr.f32.gmra.mrb[0].mxu0 %v212
    %v1812 = vpop.f32.mrb[0].mxu0
    %v1813 = vadd.f32 %v1686, %v1812
    %v1814 = vpop.f32.mrb[0].mxu0
    %1815 = vmatprep.mubr.f32.mxu0 0.0
    %1816 = vmatmul.mubr.f32.gmra.mrb[0].mxu0 %v215
    %v1817 = vpop.f32.mrb[0].mxu0
    %v1818 = vadd.f32 %v1687, %v1817
    %v1819 = vpop.f32.mrb[0].mxu0
    %1820 = vmatprep.mubr.f32.mxu0 0.0
    %1821 = vmatmul.mubr.f32.gmra.mrb[0].mxu0 %v218
    %v1822 = vpop.f32.mrb[0].mxu0
    %v1823 = vadd.f32 %v1688, %v1822
    %v1824 = vpop.f32.mrb[0].mxu0
    %1825 = vmatprep.mubr.f32.mxu0 0.0
    %1826 = vmatmul.mubr.f32.gmra.mrb[0].mxu0 %v221
    %v1827 = vpop.f32.mrb[0].mxu0
    %v1828 = vadd.f32 %v1689, %v1827
    %v1829 = vpop.f32.mrb[0].mxu0
    %1830 = vmatprep.mubr.f32.mxu0 0.0
    %1831 = vmatmul.mubr.f32.gmra.mrb[0].mxu0 %v224
    %v1832 = vpop.f32.mrb[0].mxu0
    %v1833 = vadd.f32 %v1690, %v1832
    %v1834 = vpop.f32.mrb[0].mxu0
    %1835 = vdwg.mxu0
    %v1836 = vadd.f32 %v1758, %v374
    %v1837 = vadd.f32 %v1763, %v379
    %v1838 = vadd.f32 %v1768, %v384
    %v1839 = vadd.f32 %v1773, %v389
    %v1840 = vadd.f32 %v1778, %v394
    %v1841 = vadd.f32 %v1783, %v399
    %v1842 = vadd.f32 %v1788, %v404
    %v1843 = vadd.f32 %v1793, %v409
    %v1844 = vadd.f32 %v1798, %v414
    %v1845 = vadd.f32 %v1803, %v419
    %v1846 = vadd.f32 %v1808, %v424
    %v1847 = vadd.f32 %v1813, %v429
    %v1848 = vadd.f32 %v1818, %v434
    %v1849 = vadd.f32 %v1823, %v439
    %v1850 = vadd.f32 %v1828, %v444
    %v1851 = vadd.f32 %v1833, %v449
    %v1852 = vxor.u32 %v1836, 2147483648
    %v1853 = vxor.u32 %v1837, 2147483648
    %v1854 = vxor.u32 %v1838, 2147483648
    %v1855 = vxor.u32 %v1839, 2147483648
    %v1856 = vxor.u32 %v1840, 2147483648
    %v1857 = vxor.u32 %v1841, 2147483648
    %v1858 = vxor.u32 %v1842, 2147483648
    %v1859 = vxor.u32 %v1843, 2147483648
    %v1860 = vxor.u32 %v1844, 2147483648
    %v1861 = vxor.u32 %v1845, 2147483648
    %v1862 = vxor.u32 %v1846, 2147483648
    %v1863 = vxor.u32 %v1847, 2147483648
    %v1864 = vmul.f32 %v1852, 1.442695
    %v1865 = vpow.pop %v1864
    %v1866 = vmul.f32 %v1853, 1.442695
    %v1867 = vpow.pop %v1866
    %v1868 = vmul.f32 %v1854, 1.442695
    %v1869 = vpow.pop %v1868
    %v1870 = vmul.f32 %v1855, 1.442695
    %v1871 = vpow.pop %v1870
    %v1872 = vmul.f32 %v1856, 1.442695
    %v1873 = vpow.pop %v1872
    %v1874 = vmul.f32 %v1857, 1.442695
    %v1875 = vpow.pop %v1874
    %v1876 = vmul.f32 %v1858, 1.442695
    %v1877 = vpow.pop %v1876
    %v1878 = vmul.f32 %v1859, 1.442695
    %v1879 = vpow.pop %v1878
    %v1880 = vmul.f32 %v1860, 1.442695
    %v1881 = vpow.pop %v1880
    %v1882 = vmul.f32 %v1861, 1.442695
    %v1883 = vpow.pop %v1882
    %v1884 = vmul.f32 %v1862, 1.442695
    %v1885 = vpow.pop %v1884
    %v1886 = vmul.f32 %v1863, 1.442695
    %v1887 = vpow.pop %v1886
    %v1888 = vadd.f32 %v1865, 1.0
    %v1889 = vadd.f32 %v1867, 1.0
    %v1890 = vadd.f32 %v1869, 1.0
    %v1891 = vadd.f32 %v1871, 1.0
    %v1892 = vadd.f32 %v1873, 1.0
    %v1893 = vadd.f32 %v1875, 1.0
    %v1894 = vadd.f32 %v1877, 1.0
    %v1895 = vadd.f32 %v1879, 1.0
    %v1896 = vadd.f32 %v1881, 1.0
    %v1897 = vadd.f32 %v1883, 1.0
    %v1898 = vadd.f32 %v1885, 1.0
    %v1899 = vadd.f32 %v1887, 1.0
    %v1900 = vrcp.pop %v1888
    %v1901 = vmul.f32 1.0, %v1900
    %v1902 = vrcp.pop %v1889
    %v1903 = vmul.f32 1.0, %v1902
    %v1904 = vrcp.pop %v1890
    %v1905 = vmul.f32 1.0, %v1904
    %v1906 = vrcp.pop %v1891
    %v1907 = vmul.f32 1.0, %v1906
    %v1908 = vrcp.pop %v1892
    %v1909 = vmul.f32 1.0, %v1908
    %v1910 = vrcp.pop %v1893
    %v1911 = vmul.f32 1.0, %v1910
    %v1912 = vrcp.pop %v1894
    %v1913 = vmul.f32 1.0, %v1912
    %v1914 = vrcp.pop %v1895
    %v1915 = vmul.f32 1.0, %v1914
    %v1916 = vrcp.pop %v1896
    %v1917 = vmul.f32 1.0, %v1916
    %v1918 = vrcp.pop %v1897
    %v1919 = vmul.f32 1.0, %v1918
    %v1920 = vrcp.pop %v1898
    %v1921 = vmul.f32 1.0, %v1920
    %v1922 = vrcp.pop %v1899
    %v1923 = vmul.f32 1.0, %v1922
    %v1924 = vtanh.pop %v1848
    %v1925 = vtanh.pop %v1849
    %v1926 = vtanh.pop %v1850
    %v1927 = vtanh.pop %v1851
    %v1928 = vmul.f32 %v1909, %v1659
    %v1929 = vmul.f32 %v1911, %v1660
    %v1930 = vmul.f32 %v1913, %v1661
    %v1931 = vmul.f32 %v1915, %v1662
    %v1932 = vmul.f32 %v1901, %v1924
    %v1933 = vmul.f32 %v1903, %v1925
    %v1934 = vmul.f32 %v1905, %v1926
    %v1935 = vmul.f32 %v1907, %v1927
    %v1936 = vadd.f32 %v1928, %v1932
    %v1937 = vadd.f32 %v1929, %v1933
    %v1938 = vadd.f32 %v1930, %v1934
    %v1939 = vadd.f32 %v1931, %v1935
    %v1940 = vtanh.pop %v1936
    %v1941 = vtanh.pop %v1937
    %v1942 = vtanh.pop %v1938
    %v1943 = vtanh.pop %v1939
    %v1944 = vmul.f32 %v1917, %v1940
    %v1945 = vmul.f32 %v1919, %v1941
    %v1946 = vmul.f32 %v1921, %v1942
    %v1947 = vmul.f32 %v1923, %v1943
    %v1948 = vlaneseq
    %v1949 = vshrl.u32 %v1948, 7
    %v1950 = vsub.s32 6, %v1949
    %v1951 = vrot.slane %v27, %v1950
    %v1952 = vmul.f32 %v80, %v1951
    %v1953 = vmul.f32 %v85, %v1951
    %v1954 = vmul.f32 %v90, %v1951
    %v1955 = vmul.f32 %v95, %v1951
    %v1956 = vmul.f32 %v100, %v1951
    %v1957 = vmul.f32 %v105, %v1951
    %v1958 = vmul.f32 %v110, %v1951
    %v1959 = vmul.f32 %v115, %v1951
    %v1960 = vmul.f32 %v120, %v1951
    %v1961 = vmul.f32 %v125, %v1951
    %v1962 = vmul.f32 %v130, %v1951
    %v1963 = vmul.f32 %v135, %v1951
    %v1964 = vmul.f32 %v140, %v1951
    %v1965 = vmul.f32 %v145, %v1951
    %v1966 = vmul.f32 %v150, %v1951
    %v1967 = vmul.f32 %v155, %v1951
    %1968 = vmatprep.subr.mxu0 0.0
    %1969 = vmatpush1.msra.mxu0 %v1944
    %1970 = vmatprep.subr.mxu0 0.0
    %1971 = vmatpush1.msra.mxu0 %v1945
    %1972 = vmatprep.subr.mxu0 0.0
    %1973 = vmatpush1.msra.mxu0 %v1946
    %1974 = vmatprep.subr.mxu0 0.0
    %1975 = vmatpush1.msra.mxu0 %v1947
    %1976 = vmatprep.subr.mxu0 0.0
    %1977 = vmatpush1.msra.mxu0 0.0
    %1978 = vmatprep.subr.mxu0 0.0
    %1979 = vmatpush1.msra.mxu0 0.0
    %1980 = vmatprep.subr.mxu0 0.0
    %1981 = vmatpush1.msra.mxu0 0.0
    %1982 = vmatprep.subr.mxu0 0.0
    %1983 = vmatpush1.msra.mxu0 0.0
    %1984 = vmatprep.subr.mxu0 0.0
    %1985 = vmatpush1.msra.mxu0 0.0
    %1986 = vmatprep.subr.mxu0 0.0
    %1987 = vmatpush1.msra.mxu0 0.0
    %1988 = vmatprep.subr.mxu0 0.0
    %1989 = vmatpush1.msra.mxu0 0.0
    %1990 = vmatprep.subr.mxu0 0.0
    %1991 = vmatpush1.msra.mxu0 0.0
    %1992 = vmatprep.subr.mxu0 0.0
    %1993 = vmatpush1.msra.mxu0 0.0
    %1994 = vmatprep.subr.mxu0 0.0
    %1995 = vmatpush1.msra.mxu0 0.0
    %1996 = vmatprep.subr.mxu0 0.0
    %1997 = vmatpush1.msra.mxu0 0.0
    %1998 = vmatprep.subr.mxu0 0.0
    %1999 = vmatpush1.msra.mxu0 0.0
    %2000 = vmatprep.subr.mxu0 0.0
    %2001 = vmatpush1.msra.mxu0 0.0
    %2002 = vmatprep.subr.mxu0 0.0
    %2003 = vmatpush1.msra.mxu0 0.0
    %2004 = vmatprep.subr.mxu0 0.0
    %2005 = vmatpush1.msra.mxu0 0.0
    %2006 = vmatprep.subr.mxu0 0.0
    %2007 = vmatpush1.msra.mxu0 0.0
    %2008 = vmatprep.subr.mxu0 0.0
    %2009 = vmatpush1.msra.mxu0 0.0
    %2010 = vmatprep.subr.mxu0 0.0
    %2011 = vmatpush1.msra.mxu0 0.0
    %2012 = vmatprep.subr.mxu0 0.0
    %2013 = vmatpush1.msra.mxu0 0.0
    %2014 = vmatprep.subr.mxu0 0.0
    %2015 = vmatpush1.msra.mxu0 0.0
    %2016 = vmatprep.subr.mxu0 0.0
    %2017 = vmatpush1.msra.mxu0 0.0
    %2018 = vmatprep.subr.mxu0 0.0
    %2019 = vmatpush1.msra.mxu0 0.0
    %2020 = vmatprep.subr.mxu0 0.0
    %2021 = vmatpush1.msra.mxu0 0.0
    %2022 = vmatprep.subr.mxu0 0.0
    %2023 = vmatpush1.msra.mxu0 0.0
    %2024 = vmatprep.subr.mxu0 0.0
    %2025 = vmatpush1.msra.mxu0 0.0
    %2026 = vmatprep.subr.mxu0 0.0
    %2027 = vmatpush1.msra.mxu0 0.0
    %2028 = vmatprep.subr.mxu0 0.0
    %2029 = vmatpush1.msra.mxu0 0.0
    %2030 = vmatprep.subr.mxu0 0.0
    %2031 = vmatpush1.msra.mxu0 0.0
    %2032 = vmatprep.mubr.f32.mxu0 0.0
    %2033 = vmatmul.mubr.f32.gmra.mrb[0].mxu0 %v179
    %v2034 = vpop.f32.mrb[0].mxu0
    %v2035 = vadd.f32 %v1952, %v2034
    %v2036 = vpop.f32.mrb[0].mxu0
    %2037 = vmatprep.mubr.f32.mxu0 0.0
    %2038 = vmatmul.mubr.f32.gmra.mrb[0].mxu0 %v182
    %v2039 = vpop.f32.mrb[0].mxu0
    %v2040 = vadd.f32 %v1953, %v2039
    %v2041 = vpop.f32.mrb[0].mxu0
    %2042 = vmatprep.mubr.f32.mxu0 0.0
    %2043 = vmatmul.mubr.f32.gmra.mrb[0].mxu0 %v185
    %v2044 = vpop.f32.mrb[0].mxu0
    %v2045 = vadd.f32 %v1954, %v2044
    %v2046 = vpop.f32.mrb[0].mxu0
    %2047 = vmatprep.mubr.f32.mxu0 0.0
    %2048 = vmatmul.mubr.f32.gmra.mrb[0].mxu0 %v188
    %v2049 = vpop.f32.mrb[0].mxu0
    %v2050 = vadd.f32 %v1955, %v2049
    %v2051 = vpop.f32.mrb[0].mxu0
    %2052 = vmatprep.mubr.f32.mxu0 0.0
    %2053 = vmatmul.mubr.f32.gmra.mrb[0].mxu0 %v191
    %v2054 = vpop.f32.mrb[0].mxu0
    %v2055 = vadd.f32 %v1956, %v2054
    %v2056 = vpop.f32.mrb[0].mxu0
    %2057 = vmatprep.mubr.f32.mxu0 0.0
    %2058 = vmatmul.mubr.f32.gmra.mrb[0].mxu0 %v194
    %v2059 = vpop.f32.mrb[0].mxu0
    %v2060 = vadd.f32 %v1957, %v2059
    %v2061 = vpop.f32.mrb[0].mxu0
    %2062 = vmatprep.mubr.f32.mxu0 0.0
    %2063 = vmatmul.mubr.f32.gmra.mrb[0].mxu0 %v197
    %v2064 = vpop.f32.mrb[0].mxu0
    %v2065 = vadd.f32 %v1958, %v2064
    %v2066 = vpop.f32.mrb[0].mxu0
    %2067 = vmatprep.mubr.f32.mxu0 0.0
    %2068 = vmatmul.mubr.f32.gmra.mrb[0].mxu0 %v200
    %v2069 = vpop.f32.mrb[0].mxu0
    %v2070 = vadd.f32 %v1959, %v2069
    %v2071 = vpop.f32.mrb[0].mxu0
    %2072 = vmatprep.mubr.f32.mxu0 0.0
    %2073 = vmatmul.mubr.f32.gmra.mrb[0].mxu0 %v203
    %v2074 = vpop.f32.mrb[0].mxu0
    %v2075 = vadd.f32 %v1960, %v2074
    %v2076 = vpop.f32.mrb[0].mxu0
    %2077 = vmatprep.mubr.f32.mxu0 0.0
    %2078 = vmatmul.mubr.f32.gmra.mrb[0].mxu0 %v206
    %v2079 = vpop.f32.mrb[0].mxu0
    %v2080 = vadd.f32 %v1961, %v2079
    %v2081 = vpop.f32.mrb[0].mxu0
    %2082 = vmatprep.mubr.f32.mxu0 0.0
    %2083 = vmatmul.mubr.f32.gmra.mrb[0].mxu0 %v209
    %v2084 = vpop.f32.mrb[0].mxu0
    %v2085 = vadd.f32 %v1962, %v2084
    %v2086 = vpop.f32.mrb[0].mxu0
    %2087 = vmatprep.mubr.f32.mxu0 0.0
    %2088 = vmatmul.mubr.f32.gmra.mrb[0].mxu0 %v212
    %v2089 = vpop.f32.mrb[0].mxu0
    %v2090 = vadd.f32 %v1963, %v2089
    %v2091 = vpop.f32.mrb[0].mxu0
    %2092 = vmatprep.mubr.f32.mxu0 0.0
    %2093 = vmatmul.mubr.f32.gmra.mrb[0].mxu0 %v215
    %v2094 = vpop.f32.mrb[0].mxu0
    %v2095 = vadd.f32 %v1964, %v2094
    %v2096 = vpop.f32.mrb[0].mxu0
    %2097 = vmatprep.mubr.f32.mxu0 0.0
    %2098 = vmatmul.mubr.f32.gmra.mrb[0].mxu0 %v218
    %v2099 = vpop.f32.mrb[0].mxu0
    %v2100 = vadd.f32 %v1965, %v2099
    %v2101 = vpop.f32.mrb[0].mxu0
    %2102 = vmatprep.mubr.f32.mxu0 0.0
    %2103 = vmatmul.mubr.f32.gmra.mrb[0].mxu0 %v221
    %v2104 = vpop.f32.mrb[0].mxu0
    %v2105 = vadd.f32 %v1966, %v2104
    %v2106 = vpop.f32.mrb[0].mxu0
    %2107 = vmatprep.mubr.f32.mxu0 0.0
    %2108 = vmatmul.mubr.f32.gmra.mrb[0].mxu0 %v224
    %v2109 = vpop.f32.mrb[0].mxu0
    %v2110 = vadd.f32 %v1967, %v2109
    %v2111 = vpop.f32.mrb[0].mxu0
    %2112 = vdwg.mxu0
    %v2113 = vadd.f32 %v2035, %v374
    %v2114 = vadd.f32 %v2040, %v379
    %v2115 = vadd.f32 %v2045, %v384
    %v2116 = vadd.f32 %v2050, %v389
    %v2117 = vadd.f32 %v2055, %v394
    %v2118 = vadd.f32 %v2060, %v399
    %v2119 = vadd.f32 %v2065, %v404
    %v2120 = vadd.f32 %v2070, %v409
    %v2121 = vadd.f32 %v2075, %v414
    %v2122 = vadd.f32 %v2080, %v419
    %v2123 = vadd.f32 %v2085, %v424
    %v2124 = vadd.f32 %v2090, %v429
    %v2125 = vadd.f32 %v2095, %v434
    %v2126 = vadd.f32 %v2100, %v439
    %v2127 = vadd.f32 %v2105, %v444
    %v2128 = vadd.f32 %v2110, %v449
    %v2129 = vxor.u32 %v2113, 2147483648
    %v2130 = vxor.u32 %v2114, 2147483648
    %v2131 = vxor.u32 %v2115, 2147483648
    %v2132 = vxor.u32 %v2116, 2147483648
    %v2133 = vxor.u32 %v2117, 2147483648
    %v2134 = vxor.u32 %v2118, 2147483648
    %v2135 = vxor.u32 %v2119, 2147483648
    %v2136 = vxor.u32 %v2120, 2147483648
    %v2137 = vxor.u32 %v2121, 2147483648
    %v2138 = vxor.u32 %v2122, 2147483648
    %v2139 = vxor.u32 %v2123, 2147483648
    %v2140 = vxor.u32 %v2124, 2147483648
    %v2141 = vmul.f32 %v2129, 1.442695
    %v2142 = vpow.pop %v2141
    %v2143 = vmul.f32 %v2130, 1.442695
    %v2144 = vpow.pop %v2143
    %v2145 = vmul.f32 %v2131, 1.442695
    %v2146 = vpow.pop %v2145
    %v2147 = vmul.f32 %v2132, 1.442695
    %v2148 = vpow.pop %v2147
    %v2149 = vmul.f32 %v2133, 1.442695
    %v2150 = vpow.pop %v2149
    %v2151 = vmul.f32 %v2134, 1.442695
    %v2152 = vpow.pop %v2151
    %v2153 = vmul.f32 %v2135, 1.442695
    %v2154 = vpow.pop %v2153
    %v2155 = vmul.f32 %v2136, 1.442695
    %v2156 = vpow.pop %v2155
    %v2157 = vmul.f32 %v2137, 1.442695
    %v2158 = vpow.pop %v2157
    %v2159 = vmul.f32 %v2138, 1.442695
    %v2160 = vpow.pop %v2159
    %v2161 = vmul.f32 %v2139, 1.442695
    %v2162 = vpow.pop %v2161
    %v2163 = vmul.f32 %v2140, 1.442695
    %v2164 = vpow.pop %v2163
    %v2165 = vadd.f32 %v2142, 1.0
    %v2166 = vadd.f32 %v2144, 1.0
    %v2167 = vadd.f32 %v2146, 1.0
    %v2168 = vadd.f32 %v2148, 1.0
    %v2169 = vadd.f32 %v2150, 1.0
    %v2170 = vadd.f32 %v2152, 1.0
    %v2171 = vadd.f32 %v2154, 1.0
    %v2172 = vadd.f32 %v2156, 1.0
    %v2173 = vadd.f32 %v2158, 1.0
    %v2174 = vadd.f32 %v2160, 1.0
    %v2175 = vadd.f32 %v2162, 1.0
    %v2176 = vadd.f32 %v2164, 1.0
    %v2177 = vrcp.pop %v2165
    %v2178 = vmul.f32 1.0, %v2177
    %v2179 = vrcp.pop %v2166
    %v2180 = vmul.f32 1.0, %v2179
    %v2181 = vrcp.pop %v2167
    %v2182 = vmul.f32 1.0, %v2181
    %v2183 = vrcp.pop %v2168
    %v2184 = vmul.f32 1.0, %v2183
    %v2185 = vrcp.pop %v2169
    %v2186 = vmul.f32 1.0, %v2185
    %v2187 = vrcp.pop %v2170
    %v2188 = vmul.f32 1.0, %v2187
    %v2189 = vrcp.pop %v2171
    %v2190 = vmul.f32 1.0, %v2189
    %v2191 = vrcp.pop %v2172
    %v2192 = vmul.f32 1.0, %v2191
    %v2193 = vrcp.pop %v2173
    %v2194 = vmul.f32 1.0, %v2193
    %v2195 = vrcp.pop %v2174
    %v2196 = vmul.f32 1.0, %v2195
    %v2197 = vrcp.pop %v2175
    %v2198 = vmul.f32 1.0, %v2197
    %v2199 = vrcp.pop %v2176
    %v2200 = vmul.f32 1.0, %v2199
    %v2201 = vtanh.pop %v2125
    %v2202 = vtanh.pop %v2126
    %v2203 = vtanh.pop %v2127
    %v2204 = vtanh.pop %v2128
    %v2205 = vmul.f32 %v2186, %v1936
    %v2206 = vmul.f32 %v2188, %v1937
    %v2207 = vmul.f32 %v2190, %v1938
    %v2208 = vmul.f32 %v2192, %v1939
    %v2209 = vmul.f32 %v2178, %v2201
    %v2210 = vmul.f32 %v2180, %v2202
    %v2211 = vmul.f32 %v2182, %v2203
    %v2212 = vmul.f32 %v2184, %v2204
    %v2213 = vadd.f32 %v2205, %v2209
    %v2214 = vadd.f32 %v2206, %v2210
    %v2215 = vadd.f32 %v2207, %v2211
    %v2216 = vadd.f32 %v2208, %v2212
    %v2217 = vtanh.pop %v2213
    %v2218 = vtanh.pop %v2214
    %v2219 = vtanh.pop %v2215
    %v2220 = vtanh.pop %v2216
    %v2221 = vmul.f32 %v2194, %v2217
    %v2222 = vmul.f32 %v2196, %v2218
    %v2223 = vmul.f32 %v2198, %v2219
    %v2224 = vmul.f32 %v2200, %v2220
    %v2225 = vlaneseq
    %v2226 = vshrl.u32 %v2225, 7
    %v2227 = vsub.s32 7, %v2226
    %v2228 = vrot.slane %v27, %v2227
    %v2229 = vmul.f32 %v80, %v2228
    %v2230 = vmul.f32 %v85, %v2228
    %v2231 = vmul.f32 %v90, %v2228
    %v2232 = vmul.f32 %v95, %v2228
    %v2233 = vmul.f32 %v100, %v2228
    %v2234 = vmul.f32 %v105, %v2228
    %v2235 = vmul.f32 %v110, %v2228
    %v2236 = vmul.f32 %v115, %v2228
    %v2237 = vmul.f32 %v120, %v2228
    %v2238 = vmul.f32 %v125, %v2228
    %v2239 = vmul.f32 %v130, %v2228
    %v2240 = vmul.f32 %v135, %v2228
    %v2241 = vmul.f32 %v140, %v2228
    %v2242 = vmul.f32 %v145, %v2228
    %v2243 = vmul.f32 %v150, %v2228
    %v2244 = vmul.f32 %v155, %v2228
    %2245 = vmatprep.subr.mxu0 0.0
    %2246 = vmatpush1.msra.mxu0 %v2221
    %2247 = vmatprep.subr.mxu0 0.0
    %2248 = vmatpush1.msra.mxu0 %v2222
    %2249 = vmatprep.subr.mxu0 0.0
    %2250 = vmatpush1.msra.mxu0 %v2223
    %2251 = vmatprep.subr.mxu0 0.0
    %2252 = vmatpush1.msra.mxu0 %v2224
    %2253 = vmatprep.subr.mxu0 0.0
    %2254 = vmatpush1.msra.mxu0 0.0
    %2255 = vmatprep.subr.mxu0 0.0
    %2256 = vmatpush1.msra.mxu0 0.0
    %2257 = vmatprep.subr.mxu0 0.0
    %2258 = vmatpush1.msra.mxu0 0.0
    %2259 = vmatprep.subr.mxu0 0.0
    %2260 = vmatpush1.msra.mxu0 0.0
    %2261 = vmatprep.subr.mxu0 0.0
    %2262 = vmatpush1.msra.mxu0 0.0
    %2263 = vmatprep.subr.mxu0 0.0
    %2264 = vmatpush1.msra.mxu0 0.0
    %2265 = vmatprep.subr.mxu0 0.0
    %2266 = vmatpush1.msra.mxu0 0.0
    %2267 = vmatprep.subr.mxu0 0.0
    %2268 = vmatpush1.msra.mxu0 0.0
    %2269 = vmatprep.subr.mxu0 0.0
    %2270 = vmatpush1.msra.mxu0 0.0
    %2271 = vmatprep.subr.mxu0 0.0
    %2272 = vmatpush1.msra.mxu0 0.0
    %2273 = vmatprep.subr.mxu0 0.0
    %2274 = vmatpush1.msra.mxu0 0.0
    %2275 = vmatprep.subr.mxu0 0.0
    %2276 = vmatpush1.msra.mxu0 0.0
    %2277 = vmatprep.subr.mxu0 0.0
    %2278 = vmatpush1.msra.mxu0 0.0
    %2279 = vmatprep.subr.mxu0 0.0
    %2280 = vmatpush1.msra.mxu0 0.0
    %2281 = vmatprep.subr.mxu0 0.0
    %2282 = vmatpush1.msra.mxu0 0.0
    %2283 = vmatprep.subr.mxu0 0.0
    %2284 = vmatpush1.msra.mxu0 0.0
    %2285 = vmatprep.subr.mxu0 0.0
    %2286 = vmatpush1.msra.mxu0 0.0
    %2287 = vmatprep.subr.mxu0 0.0
    %2288 = vmatpush1.msra.mxu0 0.0
    %2289 = vmatprep.subr.mxu0 0.0
    %2290 = vmatpush1.msra.mxu0 0.0
    %2291 = vmatprep.subr.mxu0 0.0
    %2292 = vmatpush1.msra.mxu0 0.0
    %2293 = vmatprep.subr.mxu0 0.0
    %2294 = vmatpush1.msra.mxu0 0.0
    %2295 = vmatprep.subr.mxu0 0.0
    %2296 = vmatpush1.msra.mxu0 0.0
    %2297 = vmatprep.subr.mxu0 0.0
    %2298 = vmatpush1.msra.mxu0 0.0
    %2299 = vmatprep.subr.mxu0 0.0
    %2300 = vmatpush1.msra.mxu0 0.0
    %2301 = vmatprep.subr.mxu0 0.0
    %2302 = vmatpush1.msra.mxu0 0.0
    %2303 = vmatprep.subr.mxu0 0.0
    %2304 = vmatpush1.msra.mxu0 0.0
    %2305 = vmatprep.subr.mxu0 0.0
    %2306 = vmatpush1.msra.mxu0 0.0
    %2307 = vmatprep.subr.mxu0 0.0
    %2308 = vmatpush1.msra.mxu0 0.0
    %2309 = vmatprep.mubr.f32.mxu0 0.0
    %2310 = vmatmul.mubr.f32.gmra.mrb[0].mxu0 %v179
    %v2311 = vpop.f32.mrb[0].mxu0
    %v2312 = vadd.f32 %v2229, %v2311
    %v2313 = vpop.f32.mrb[0].mxu0
    %2314 = vmatprep.mubr.f32.mxu0 0.0
    %2315 = vmatmul.mubr.f32.gmra.mrb[0].mxu0 %v182
    %v2316 = vpop.f32.mrb[0].mxu0
    %v2317 = vadd.f32 %v2230, %v2316
    %v2318 = vpop.f32.mrb[0].mxu0
    %2319 = vmatprep.mubr.f32.mxu0 0.0
    %2320 = vmatmul.mubr.f32.gmra.mrb[0].mxu0 %v185
    %v2321 = vpop.f32.mrb[0].mxu0
    %v2322 = vadd.f32 %v2231, %v2321
    %v2323 = vpop.f32.mrb[0].mxu0
    %2324 = vmatprep.mubr.f32.mxu0 0.0
    %2325 = vmatmul.mubr.f32.gmra.mrb[0].mxu0 %v188
    %v2326 = vpop.f32.mrb[0].mxu0
    %v2327 = vadd.f32 %v2232, %v2326
    %v2328 = vpop.f32.mrb[0].mxu0
    %2329 = vmatprep.mubr.f32.mxu0 0.0
    %2330 = vmatmul.mubr.f32.gmra.mrb[0].mxu0 %v191
    %v2331 = vpop.f32.mrb[0].mxu0
    %v2332 = vadd.f32 %v2233, %v2331
    %v2333 = vpop.f32.mrb[0].mxu0
    %2334 = vmatprep.mubr.f32.mxu0 0.0
    %2335 = vmatmul.mubr.f32.gmra.mrb[0].mxu0 %v194
    %v2336 = vpop.f32.mrb[0].mxu0
    %v2337 = vadd.f32 %v2234, %v2336
    %v2338 = vpop.f32.mrb[0].mxu0
    %2339 = vmatprep.mubr.f32.mxu0 0.0
    %2340 = vmatmul.mubr.f32.gmra.mrb[0].mxu0 %v197
    %v2341 = vpop.f32.mrb[0].mxu0
    %v2342 = vadd.f32 %v2235, %v2341
    %v2343 = vpop.f32.mrb[0].mxu0
    %2344 = vmatprep.mubr.f32.mxu0 0.0
    %2345 = vmatmul.mubr.f32.gmra.mrb[0].mxu0 %v200
    %v2346 = vpop.f32.mrb[0].mxu0
    %v2347 = vadd.f32 %v2236, %v2346
    %v2348 = vpop.f32.mrb[0].mxu0
    %2349 = vmatprep.mubr.f32.mxu0 0.0
    %2350 = vmatmul.mubr.f32.gmra.mrb[0].mxu0 %v203
    %v2351 = vpop.f32.mrb[0].mxu0
    %v2352 = vadd.f32 %v2237, %v2351
    %v2353 = vpop.f32.mrb[0].mxu0
    %2354 = vmatprep.mubr.f32.mxu0 0.0
    %2355 = vmatmul.mubr.f32.gmra.mrb[0].mxu0 %v206
    %v2356 = vpop.f32.mrb[0].mxu0
    %v2357 = vadd.f32 %v2238, %v2356
    %v2358 = vpop.f32.mrb[0].mxu0
    %2359 = vmatprep.mubr.f32.mxu0 0.0
    %2360 = vmatmul.mubr.f32.gmra.mrb[0].mxu0 %v209
    %v2361 = vpop.f32.mrb[0].mxu0
    %v2362 = vadd.f32 %v2239, %v2361
    %v2363 = vpop.f32.mrb[0].mxu0
    %2364 = vmatprep.mubr.f32.mxu0 0.0
    %2365 = vmatmul.mubr.f32.gmra.mrb[0].mxu0 %v212
    %v2366 = vpop.f32.mrb[0].mxu0
    %v2367 = vadd.f32 %v2240, %v2366
    %v2368 = vpop.f32.mrb[0].mxu0
    %2369 = vmatprep.mubr.f32.mxu0 0.0
    %2370 = vmatmul.mubr.f32.gmra.mrb[0].mxu0 %v215
    %v2371 = vpop.f32.mrb[0].mxu0
    %v2372 = vadd.f32 %v2241, %v2371
    %v2373 = vpop.f32.mrb[0].mxu0
    %2374 = vmatprep.mubr.f32.mxu0 0.0
    %2375 = vmatmul.mubr.f32.gmra.mrb[0].mxu0 %v218
    %v2376 = vpop.f32.mrb[0].mxu0
    %v2377 = vadd.f32 %v2242, %v2376
    %v2378 = vpop.f32.mrb[0].mxu0
    %2379 = vmatprep.mubr.f32.mxu0 0.0
    %2380 = vmatmul.mubr.f32.gmra.mrb[0].mxu0 %v221
    %v2381 = vpop.f32.mrb[0].mxu0
    %v2382 = vadd.f32 %v2243, %v2381
    %v2383 = vpop.f32.mrb[0].mxu0
    %2384 = vmatprep.mubr.f32.mxu0 0.0
    %2385 = vmatmul.mubr.f32.gmra.mrb[0].mxu0 %v224
    %v2386 = vpop.f32.mrb[0].mxu0
    %v2387 = vadd.f32 %v2244, %v2386
    %v2388 = vpop.f32.mrb[0].mxu0
    %2389 = vdwg.mxu0
    %v2390 = vadd.f32 %v2312, %v374
    %v2391 = vadd.f32 %v2317, %v379
    %v2392 = vadd.f32 %v2322, %v384
    %v2393 = vadd.f32 %v2327, %v389
    %v2394 = vadd.f32 %v2332, %v394
    %v2395 = vadd.f32 %v2337, %v399
    %v2396 = vadd.f32 %v2342, %v404
    %v2397 = vadd.f32 %v2347, %v409
    %v2398 = vadd.f32 %v2352, %v414
    %v2399 = vadd.f32 %v2357, %v419
    %v2400 = vadd.f32 %v2362, %v424
    %v2401 = vadd.f32 %v2367, %v429
    %v2402 = vadd.f32 %v2372, %v434
    %v2403 = vadd.f32 %v2377, %v439
    %v2404 = vadd.f32 %v2382, %v444
    %v2405 = vadd.f32 %v2387, %v449
    %v2406 = vxor.u32 %v2390, 2147483648
    %v2407 = vxor.u32 %v2391, 2147483648
    %v2408 = vxor.u32 %v2392, 2147483648
    %v2409 = vxor.u32 %v2393, 2147483648
    %v2410 = vxor.u32 %v2394, 2147483648
    %v2411 = vxor.u32 %v2395, 2147483648
    %v2412 = vxor.u32 %v2396, 2147483648
    %v2413 = vxor.u32 %v2397, 2147483648
    %v2414 = vxor.u32 %v2398, 2147483648
    %v2415 = vxor.u32 %v2399, 2147483648
    %v2416 = vxor.u32 %v2400, 2147483648
    %v2417 = vxor.u32 %v2401, 2147483648
    %v2418 = vmul.f32 %v2406, 1.442695
    %v2419 = vpow.pop %v2418
    %v2420 = vmul.f32 %v2407, 1.442695
    %v2421 = vpow.pop %v2420
    %v2422 = vmul.f32 %v2408, 1.442695
    %v2423 = vpow.pop %v2422
    %v2424 = vmul.f32 %v2409, 1.442695
    %v2425 = vpow.pop %v2424
    %v2426 = vmul.f32 %v2410, 1.442695
    %v2427 = vpow.pop %v2426
    %v2428 = vmul.f32 %v2411, 1.442695
    %v2429 = vpow.pop %v2428
    %v2430 = vmul.f32 %v2412, 1.442695
    %v2431 = vpow.pop %v2430
    %v2432 = vmul.f32 %v2413, 1.442695
    %v2433 = vpow.pop %v2432
    %v2434 = vmul.f32 %v2414, 1.442695
    %v2435 = vpow.pop %v2434
    %v2436 = vmul.f32 %v2415, 1.442695
    %v2437 = vpow.pop %v2436
    %v2438 = vmul.f32 %v2416, 1.442695
    %v2439 = vpow.pop %v2438
    %v2440 = vmul.f32 %v2417, 1.442695
    %v2441 = vpow.pop %v2440
    %v2442 = vadd.f32 %v2419, 1.0
    %v2443 = vadd.f32 %v2421, 1.0
    %v2444 = vadd.f32 %v2423, 1.0
    %v2445 = vadd.f32 %v2425, 1.0
    %v2446 = vadd.f32 %v2427, 1.0
    %v2447 = vadd.f32 %v2429, 1.0
    %v2448 = vadd.f32 %v2431, 1.0
    %v2449 = vadd.f32 %v2433, 1.0
    %v2450 = vadd.f32 %v2435, 1.0
    %v2451 = vadd.f32 %v2437, 1.0
    %v2452 = vadd.f32 %v2439, 1.0
    %v2453 = vadd.f32 %v2441, 1.0
    %v2454 = vrcp.pop %v2442
    %v2455 = vmul.f32 1.0, %v2454
    %v2456 = vrcp.pop %v2443
    %v2457 = vmul.f32 1.0, %v2456
    %v2458 = vrcp.pop %v2444
    %v2459 = vmul.f32 1.0, %v2458
    %v2460 = vrcp.pop %v2445
    %v2461 = vmul.f32 1.0, %v2460
    %v2462 = vrcp.pop %v2446
    %v2463 = vmul.f32 1.0, %v2462
    %v2464 = vrcp.pop %v2447
    %v2465 = vmul.f32 1.0, %v2464
    %v2466 = vrcp.pop %v2448
    %v2467 = vmul.f32 1.0, %v2466
    %v2468 = vrcp.pop %v2449
    %v2469 = vmul.f32 1.0, %v2468
    %v2470 = vrcp.pop %v2450
    %v2471 = vmul.f32 1.0, %v2470
    %v2472 = vrcp.pop %v2451
    %v2473 = vmul.f32 1.0, %v2472
    %v2474 = vrcp.pop %v2452
    %v2475 = vmul.f32 1.0, %v2474
    %v2476 = vrcp.pop %v2453
    %v2477 = vmul.f32 1.0, %v2476
    %v2478 = vtanh.pop %v2402
    %v2479 = vtanh.pop %v2403
    %v2480 = vtanh.pop %v2404
    %v2481 = vtanh.pop %v2405
    %v2482 = vmul.f32 %v2463, %v2213
    %v2483 = vmul.f32 %v2465, %v2214
    %v2484 = vmul.f32 %v2467, %v2215
    %v2485 = vmul.f32 %v2469, %v2216
    %v2486 = vmul.f32 %v2455, %v2478
    %v2487 = vmul.f32 %v2457, %v2479
    %v2488 = vmul.f32 %v2459, %v2480
    %v2489 = vmul.f32 %v2461, %v2481
    %v2490 = vadd.f32 %v2482, %v2486
    %v2491 = vadd.f32 %v2483, %v2487
    %v2492 = vadd.f32 %v2484, %v2488
    %v2493 = vadd.f32 %v2485, %v2489
    %v2494 = vtanh.pop %v2490
    %v2495 = vtanh.pop %v2491
    %v2496 = vtanh.pop %v2492
    %v2497 = vtanh.pop %v2493
    %v2498 = vmul.f32 %v2471, %v2494
    %v2499 = vmul.f32 %v2473, %v2495
    %v2500 = vmul.f32 %v2475, %v2496
    %v2501 = vmul.f32 %v2477, %v2497
    %v2502 = vld [vmem:[%s4] sm:$0x3]
    %v2503 = vld [vmem:[%s5] sm:$0x3]
    %2505 = vset.pattern.permute.xlu0 0
    %2506 = vperm.xlu0 %2505, %v2503
    %v2507 = vpop.permute.xlu0 %2506
    %v2509 = vlaneseq
    %v2510 = vshrl.u32 %v2509, 7
    %v2511 = vsub.s32 0, %v2510
    %v2512 = vrot.slane %v28, %v2511
    %v2513 = vmul.f32 %v2507, %v2512
    %v2515 = vsel %vm177, %v2502, 0
    %2517 = vmatprep.subr.mxu0 0.0
    %2518 = vmatpush1.msra.mxu0 %v2498
    %2519 = vmatprep.subr.mxu0 0.0
    %2520 = vmatpush1.msra.mxu0 %v2499
    %2521 = vmatprep.subr.mxu0 0.0
    %2522 = vmatpush1.msra.mxu0 %v2500
    %2523 = vmatprep.subr.mxu0 0.0
    %2524 = vmatpush1.msra.mxu0 %v2501
    %2525 = vmatprep.subr.mxu0 0.0
    %2526 = vmatpush1.msra.mxu0 0.0
    %2527 = vmatprep.subr.mxu0 0.0
    %2528 = vmatpush1.msra.mxu0 0.0
    %2529 = vmatprep.subr.mxu0 0.0
    %2530 = vmatpush1.msra.mxu0 0.0
    %2531 = vmatprep.subr.mxu0 0.0
    %2532 = vmatpush1.msra.mxu0 0.0
    %2533 = vmatprep.subr.mxu0 0.0
    %2534 = vmatpush1.msra.mxu0 0.0
    %2535 = vmatprep.subr.mxu0 0.0
    %2536 = vmatpush1.msra.mxu0 0.0
    %2537 = vmatprep.subr.mxu0 0.0
    %2538 = vmatpush1.msra.mxu0 0.0
    %2539 = vmatprep.subr.mxu0 0.0
    %2540 = vmatpush1.msra.mxu0 0.0
    %2541 = vmatprep.subr.mxu0 0.0
    %2542 = vmatpush1.msra.mxu0 0.0
    %2543 = vmatprep.subr.mxu0 0.0
    %2544 = vmatpush1.msra.mxu0 0.0
    %2545 = vmatprep.subr.mxu0 0.0
    %2546 = vmatpush1.msra.mxu0 0.0
    %2547 = vmatprep.subr.mxu0 0.0
    %2548 = vmatpush1.msra.mxu0 0.0
    %2549 = vmatprep.subr.mxu0 0.0
    %2550 = vmatpush1.msra.mxu0 0.0
    %2551 = vmatprep.subr.mxu0 0.0
    %2552 = vmatpush1.msra.mxu0 0.0
    %2553 = vmatprep.subr.mxu0 0.0
    %2554 = vmatpush1.msra.mxu0 0.0
    %2555 = vmatprep.subr.mxu0 0.0
    %2556 = vmatpush1.msra.mxu0 0.0
    %2557 = vmatprep.subr.mxu0 0.0
    %2558 = vmatpush1.msra.mxu0 0.0
    %2559 = vmatprep.subr.mxu0 0.0
    %2560 = vmatpush1.msra.mxu0 0.0
    %2561 = vmatprep.subr.mxu0 0.0
    %2562 = vmatpush1.msra.mxu0 0.0
    %2563 = vmatprep.subr.mxu0 0.0
    %2564 = vmatpush1.msra.mxu0 0.0
    %2565 = vmatprep.subr.mxu0 0.0
    %2566 = vmatpush1.msra.mxu0 0.0
    %2567 = vmatprep.subr.mxu0 0.0
    %2568 = vmatpush1.msra.mxu0 0.0
    %2569 = vmatprep.subr.mxu0 0.0
    %2570 = vmatpush1.msra.mxu0 0.0
    %2571 = vmatprep.subr.mxu0 0.0
    %2572 = vmatpush1.msra.mxu0 0.0
    %2573 = vmatprep.subr.mxu0 0.0
    %2574 = vmatpush1.msra.mxu0 0.0
    %2575 = vmatprep.subr.mxu0 0.0
    %2576 = vmatpush1.msra.mxu0 0.0
    %2577 = vmatprep.subr.mxu0 0.0
    %2578 = vmatpush1.msra.mxu0 0.0
    %2579 = vmatprep.subr.mxu0 0.0
    %2580 = vmatpush1.msra.mxu0 0.0
    %2581 = vmatprep.mubr.f32.mxu0 0.0
    %2582 = vmatmul.mubr.f32.gmra.mrb[0].mxu0 %v2515
    %v2583 = vpop.f32.mrb[0].mxu0
    %v2584 = vadd.f32 %v2513, %v2583
    %v2585 = vpop.f32.mrb[0].mxu0
    %2586 = vdwg.mxu0
    %v2587 = vld [vmem:[%s6] sm:$0x3]
    %2589 = vset.pattern.permute.xlu0 0
    %2590 = vperm.xlu0 %2589, %v2587
    %v2591 = vpop.permute.xlu0 %2590
    %v2593 = vadd.f32 %v2584, %v2591
    %v2594 = vlaneseq
    %v2595 = vshrl.u32 %v2594, 7
    %vm2596 = vcmp.eq.s32.totalorder %v2595, 0
    %v2597 = vxor.u32 %v2593, 2147483648
    %v2598 = vmul.f32 %v2597, 1.442695
    %v2599 = vpow.pop %v2598
    %v2600 = vadd.f32 %v2599, 1.0
    %v2601 = vrcp.pop %v2600
    %v2602 = vmul.f32 1.0, %v2601
    %v2603 = vsel %vm2596, %v2602, %v2593
    %vm2604 = vcmask 9216
    %2605 = vst.msk [vmem:[#allocation2] sm:$0x3] %vm2604, %v2603
    // Predicated region
    $region30: #{tpu_custom_call.1} parent=1 // pred_check
      _
    $region31: #{tpu_custom_call.1} parent=1 // pred_check_branch
      %2607 = sbr.rel (0) target = $region33
    $region32: #{tpu_custom_call.1} parent=1 // pred_region
      %s2609 = ssub.s32 32, 32
      %2610 = vsyncadd [#allocation3], %s2609
      %s2612 = sshll.u32 [#allocation2], 4
      %s2613 = int_to_ptr.vmem [resolvable:$true] %s2612
      %2615 = dma.vmem_to_hbm [thread:$0]  %s2613, 32, %s7, [#allocation3]
    $region33: #{tpu_custom_call.1} parent=1 // pred_fallthru
      _
    // Predicated region
    $region34: #{tpu_custom_call.1} parent=1 // pred_check
      _
    $region35: #{tpu_custom_call.1} parent=1 // pred_check_branch
      %2617 = sbr.rel (0) target = $region37
    $region36: #{tpu_custom_call.1} parent=1 // pred_region
      %2618 = dma.done [#allocation3], 32
    $region37: #{tpu_custom_call.1} parent=1 // pred_fallthru
      _
    %2619 = vsyncpa [#allocation3], 1

</llo_original>
